<compile_context>
chip_gen: v7x
topology: tpu7x:2x2x1
jax: 0.10.0
libtpu: 0.0.40
codegen_flags: <defaults>
</compile_context>

<pallas_src>
import functools
import math

import numpy as np
import jax
import jax.numpy as jnp
from jax import lax
from jax.experimental import pallas as pl
from jax.experimental.pallas import tpu as pltpu

D_MODEL = 32
N_HEAD = 4
DIM_FF = 64
NUM_LAYERS = 2
LN_EPS = 1e-5
HEAD_DIM = D_MODEL // N_HEAD


def _layer_norm(x, w, b):
    mu = jnp.mean(x, axis=-1, keepdims=True)
    var = jnp.mean(jnp.square(x - mu), axis=-1, keepdims=True)
    return (x - mu) * lax.rsqrt(var + LN_EPS) * w + b


# ---------------------------------------------------------------------------
# Fused Pallas kernel: all encoder layers + optional final LayerNorm, one step
# ---------------------------------------------------------------------------
def encoder_kernel(apply_final_norm, batch, seq,
                   x_ref, pos_ref, hmask_ref, bdiag_ref,
                   wqk_ref, bqk_ref, wv_ref, bv_ref, wo_ref, bo_ref,
                   ln1w_ref, ln1b_ref, w1_ref, b1_ref, w2_ref, b2_ref,
                   ln2w_ref, ln2b_ref, fnw_ref, fnb_ref,
                   out_ref):
    x = x_ref[...]           # (B*S, D) row-major tokens (batch folded into tokens)
    pos = pos_ref[...]       # (B*S, D)
    hmask = hmask_ref[...]   # (H*S, D)   0/1 block-diagonal head mask
    bdiag = bdiag_ref[...]   # (H*S, H*S) block-diagonal ones (per-head column blocks)

    for l in range(NUM_LAYERS):                      # static unroll over layers
        xqk = x + pos                                # pos added to q/k only
        # fused Q/K projection (scale pre-folded into Wq/bq); V projection separate.
        qk = jnp.dot(xqk, wqk_ref[l], preferred_element_type=jnp.float32) + bqk_ref[l]
        v = jnp.dot(x, wv_ref[l], preferred_element_type=jnp.float32) + bv_ref[l]
        q = qk[:, :D_MODEL]                          # (B*S, D)
        k = qk[:, D_MODEL:]                          # (B*S, D)

        attn_rows = []
        for b in range(batch):                       # static unroll over batch
            qb = q[b * seq:(b + 1) * seq]            # (S, D) sublane slices
            kb = k[b * seq:(b + 1) * seq]
            vb = v[b * seq:(b + 1) * seq]
            # block-diagonal head packing: row h*S+j = k[j] restricted to head h
            kp = jnp.concatenate([kb] * N_HEAD, axis=0) * hmask    # (H*S, D)
            vp = jnp.concatenate([vb] * N_HEAD, axis=0) * hmask    # (H*S, D)
            # all heads' scores in ONE matmul: s[i, h*S+j] = q_h[i] . k_h[j] (scaled)
            s = lax.dot_general(qb, kp, (((1,), (1,)), ((), ())),
                                preferred_element_type=jnp.float32)   # (S, H*S)
            s = s - jnp.max(s, axis=-1, keepdims=True)   # per-row shift (softmax-invariant)
            e = jnp.exp(s)
            # per-head denominators, broadcast across each head's block, in one matmul
            denom = jnp.dot(e, bdiag, preferred_element_type=jnp.float32)
            a = e / denom                                # exact per-head softmax
            # AV for all heads in one matmul -> (S, D), heads land in their own columns
            attn_rows.append(jnp.dot(a, vp, preferred_element_type=jnp.float32))
        attn = jnp.concatenate(attn_rows, axis=0)        # (B*S, D) sublane concat
        attn = jnp.dot(attn, wo_ref[l], preferred_element_type=jnp.float32) + bo_ref[l]

        # dropout layers are identity in eval mode
        x = _layer_norm(x + attn, ln1w_ref[l], ln1b_ref[l])
        h1 = jnp.maximum(
            jnp.dot(x, w1_ref[l], preferred_element_type=jnp.float32) + b1_ref[l], 0.0)
        ff = jnp.dot(h1, w2_ref[l], preferred_element_type=jnp.float32) + b2_ref[l]
        x = _layer_norm(x + ff, ln2w_ref[l], ln2b_ref[l])

    if apply_final_norm:
        x = _layer_norm(x, fnw_ref[...], fnb_ref[...])
    out_ref[...] = x


# ---------------------------------------------------------------------------
# Host-side one-time weight packing (NOT inside the jitted forward)
# ---------------------------------------------------------------------------
def pack_params(layer_params, norm_params):
    scale = 1.0 / math.sqrt(HEAD_DIM)
    stack = lambda key: jnp.stack([p[key] for p in layer_params], axis=0)
    wqk = jnp.stack([jnp.concatenate([p["wq"] * scale, p["wk"]], axis=1)
                     for p in layer_params], axis=0)                    # (L, D, 2D)
    bqk = jnp.stack([jnp.concatenate([p["bq"] * scale, p["bk"]], axis=1)
                     for p in layer_params], axis=0)                    # (L, 1, 2D)
    if norm_params is not None:
        fnw, fnb = norm_params["w"], norm_params["b"]
    else:
        fnw = jnp.ones((1, D_MODEL), jnp.float32)
        fnb = jnp.zeros((1, D_MODEL), jnp.float32)
    return [wqk, bqk, stack("wv"), stack("bv"), stack("wo"), stack("bo"),
            stack("ln1w"), stack("ln1b"), stack("w1"), stack("b1"),
            stack("w2"), stack("b2"), stack("ln2w"), stack("ln2b"), fnw, fnb]


def _attn_masks(seq):
    """Constant block-diagonal masks for lane-dense head packing."""
    rows = np.arange(N_HEAD * seq)
    head_of_row = rows // seq
    hmask = (head_of_row[:, None] == (np.arange(D_MODEL)[None, :] // HEAD_DIM))
    bdiag = (head_of_row[:, None] == (np.arange(N_HEAD * seq)[None, :] // seq))
    return jnp.asarray(hmask, jnp.float32), jnp.asarray(bdiag, jnp.float32)


# ---------------------------------------------------------------------------
# Wrapper around the single pallas_call (no grid: one step, everything in VMEM)
# ---------------------------------------------------------------------------
@functools.partial(jax.jit, static_argnames=("apply_final_norm",))
def transformer_encoder(src_sbd, pos_sbd, packed, apply_final_norm=True):
    """src/pos are (S, B, D) as in the PyTorch module; returns (S, B, D)."""
    S, B, D = src_sbd.shape
    x = jnp.transpose(src_sbd, (1, 0, 2)).reshape(B * S, D)   # batch folded into tokens
    p = jnp.transpose(pos_sbd, (1, 0, 2)).reshape(B * S, D)
    hmask, bdiag = _attn_masks(S)

    vmem = pl.BlockSpec(memory_space=pltpu.MemorySpace.VMEM)
    n_inputs = 4 + len(packed)
    out = pl.pallas_call(
        functools.partial(encoder_kernel, apply_final_norm, B, S),
        out_shape=jax.ShapeDtypeStruct((B * S, D), jnp.float32),
        in_specs=[vmem] * n_inputs,
        out_specs=vmem,
    )(x, p, hmask, bdiag, *packed)

    return out.reshape(B, S, D).transpose(1, 0, 2)


# ---------------------------------------------------------------------------
# Deterministic parameter init + pure-JAX reference (unfused weight layout)
# ---------------------------------------------------------------------------
def init_layer_params(key):
    D, F = D_MODEL, DIM_FF
    ks = jax.random.split(key, 12)
    s = 0.05
    n = lambda k, shape: jax.random.normal(k, shape, jnp.float32) * s
    return dict(
        wq=n(ks[0], (D, D)), bq=n(ks[1], (1, D)),
        wk=n(ks[2], (D, D)), bk=n(ks[3], (1, D)),
        wv=n(ks[4], (D, D)), bv=n(ks[5], (1, D)),
        wo=n(ks[6], (D, D)), bo=n(ks[7], (1, D)),
        ln1w=jnp.ones((1, D), jnp.float32), ln1b=jnp.zeros((1, D), jnp.float32),
        w1=n(ks[8], (D, F)), b1=n(ks[9], (1, F)),
        w2=n(ks[10], (F, D)), b2=n(ks[11], (1, D)),
        ln2w=jnp.ones((1, D), jnp.float32), ln2b=jnp.zeros((1, D), jnp.float32),
    )


def ref_layer(x, pos, prm):
    B, S, D = x.shape
    H, Dh = N_HEAD, HEAD_DIM
    qk = x + pos
    q = qk @ prm["wq"] + prm["bq"]
    k = qk @ prm["wk"] + prm["bk"]
    v = x @ prm["wv"] + prm["bv"]
    q = q.reshape(B, S, H, Dh).transpose(0, 2, 1, 3)
    k = k.reshape(B, S, H, Dh).transpose(0, 2, 1, 3)
    v = v.reshape(B, S, H, Dh).transpose(0, 2, 1, 3)
    s = jnp.einsum("bhqd,bhkd->bhqk", q, k) / math.sqrt(Dh)
    a = jax.nn.softmax(s, axis=-1)
    o = jnp.einsum("bhqk,bhkd->bhqd", a, v).transpose(0, 2, 1, 3).reshape(B, S, D)
    o = o @ prm["wo"] + prm["bo"]
    x = _layer_norm(x + o, prm["ln1w"], prm["ln1b"])
    ff = jnp.maximum(x @ prm["w1"] + prm["b1"], 0.0) @ prm["w2"] + prm["b2"]
    return _layer_norm(x + ff, prm["ln2w"], prm["ln2b"])


def ref_encoder(src_sbd, pos_sbd, layer_params, norm_params):
    x = jnp.transpose(src_sbd, (1, 0, 2))
    p = jnp.transpose(pos_sbd, (1, 0, 2))
    for prm in layer_params:
        x = ref_layer(x, p, prm)
    if norm_params is not None:
        x = _layer_norm(x, norm_params["w"], norm_params["b"])
    return jnp.transpose(x, (1, 0, 2))


# ---------------------------------------------------------------------------
if __name__ == "__main__":
    S, B, D = 8, 2, D_MODEL
    key = jax.random.PRNGKey(0)
    k_src, k_pos, k_par = jax.random.split(key, 3)

    src = jax.random.normal(k_src, (S, B, D), jnp.float32)   # (seq, batch, d_model)
    pos = jax.random.normal(k_pos, (S, B, D), jnp.float32)

    layer_keys = jax.random.split(k_par, NUM_LAYERS)
    layer_params = [init_layer_params(k) for k in layer_keys]
    norm_params = {"w": jnp.ones((1, D), jnp.float32),
                   "b": jnp.zeros((1, D), jnp.float32)}

    # One-time packing at model-build time (outside the jitted forward).
    packed = pack_params(layer_params, norm_params)

    out = jax.block_until_ready(transformer_encoder(src, pos, packed,
                                                    apply_final_norm=True))

    ref = ref_encoder(src, pos, layer_params, norm_params)
    assert out.shape == (S, B, D)
    assert jnp.allclose(out, ref, atol=1e-3, rtol=1e-3), "mismatch vs JAX reference"

    print("KERNEL_OK")
</pallas_src>

<mosaic_0001>
module attributes {stable_mosaic.version = 11 : i64} {
  func.func @encoder_kernel(%arg0: memref<16x32xf32, #tpu.memory_space<vmem>>, %arg1: memref<16x32xf32, #tpu.memory_space<vmem>>, %arg2: memref<32x32xf32, #tpu.memory_space<vmem>>, %arg3: memref<32x32xf32, #tpu.memory_space<vmem>>, %arg4: memref<2x32x64xf32, #tpu.memory_space<vmem>>, %arg5: memref<2x1x64xf32, #tpu.memory_space<vmem>>, %arg6: memref<2x32x32xf32, #tpu.memory_space<vmem>>, %arg7: memref<2x1x32xf32, #tpu.memory_space<vmem>>, %arg8: memref<2x32x32xf32, #tpu.memory_space<vmem>>, %arg9: memref<2x1x32xf32, #tpu.memory_space<vmem>>, %arg10: memref<2x1x32xf32, #tpu.memory_space<vmem>>, %arg11: memref<2x1x32xf32, #tpu.memory_space<vmem>>, %arg12: memref<2x32x64xf32, #tpu.memory_space<vmem>>, %arg13: memref<2x1x64xf32, #tpu.memory_space<vmem>>, %arg14: memref<2x64x32xf32, #tpu.memory_space<vmem>>, %arg15: memref<2x1x32xf32, #tpu.memory_space<vmem>>, %arg16: memref<2x1x32xf32, #tpu.memory_space<vmem>>, %arg17: memref<2x1x32xf32, #tpu.memory_space<vmem>>, %arg18: memref<1x32xf32, #tpu.memory_space<vmem>>, %arg19: memref<1x32xf32, #tpu.memory_space<vmem>>, %arg20: memref<16x32xf32, #tpu.memory_space<vmem>>) attributes {dimension_semantics = [], scalar_prefetch = 0 : i64, scratch_operands = 0 : i64, tpu.core_type = #tpu.core_type<tc>} {
    %c0 = arith.constant 0 : index
    %c0_0 = arith.constant 0 : index
    %0 = vector.load %arg0[%c0, %c0_0] : memref<16x32xf32, #tpu.memory_space<vmem>>, vector<16x32xf32>
    %c0_1 = arith.constant 0 : index
    %c0_2 = arith.constant 0 : index
    %1 = vector.load %arg1[%c0_1, %c0_2] : memref<16x32xf32, #tpu.memory_space<vmem>>, vector<16x32xf32>
    %c0_3 = arith.constant 0 : index
    %c0_4 = arith.constant 0 : index
    %2 = vector.load %arg2[%c0_3, %c0_4] : memref<32x32xf32, #tpu.memory_space<vmem>>, vector<32x32xf32>
    %c0_5 = arith.constant 0 : index
    %c0_6 = arith.constant 0 : index
    %3 = vector.load %arg3[%c0_5, %c0_6] : memref<32x32xf32, #tpu.memory_space<vmem>>, vector<32x32xf32>
    %4 = arith.addf %0, %1 : vector<16x32xf32>
    %c0_7 = arith.constant 0 : index
    %c0_8 = arith.constant 0 : index
    %c0_9 = arith.constant 0 : index
    %5 = vector.load %arg4[%c0_7, %c0_8, %c0_9] : memref<2x32x64xf32, #tpu.memory_space<vmem>>, vector<1x32x64xf32>
    %6 = vector.shape_cast %5 : vector<1x32x64xf32> to vector<32x64xf32>
    %cst = arith.constant dense<0.000000e+00> : vector<16x64xf32>
    %7 = tpu.matmul %4, %6, %cst {dimension_numbers = #tpu.dot_dimension_numbers<[1], [0], [0], [1], [0, 0, 1, 1], [], []>} : vector<16x32xf32>, vector<32x64xf32>, vector<16x64xf32> -> vector<16x64xf32>
    %c0_10 = arith.constant 0 : index
    %c0_11 = arith.constant 0 : index
    %c0_12 = arith.constant 0 : index
    %8 = vector.load %arg5[%c0_10, %c0_11, %c0_12] : memref<2x1x64xf32, #tpu.memory_space<vmem>>, vector<1x1x64xf32>
    %9 = vector.shape_cast %8 : vector<1x1x64xf32> to vector<1x64xf32>
    %10 = vector.broadcast %9 : vector<1x64xf32> to vector<16x64xf32>
    %11 = arith.addf %7, %10 : vector<16x64xf32>
    %c0_13 = arith.constant 0 : index
    %c0_14 = arith.constant 0 : index
    %c0_15 = arith.constant 0 : index
    %12 = vector.load %arg6[%c0_13, %c0_14, %c0_15] : memref<2x32x32xf32, #tpu.memory_space<vmem>>, vector<1x32x32xf32>
    %13 = vector.shape_cast %12 : vector<1x32x32xf32> to vector<32x32xf32>
    %cst_16 = arith.constant dense<0.000000e+00> : vector<16x32xf32>
    %14 = tpu.matmul %0, %13, %cst_16 {dimension_numbers = #tpu.dot_dimension_numbers<[1], [0], [0], [1], [0, 0, 1, 1], [], []>} : vector<16x32xf32>, vector<32x32xf32>, vector<16x32xf32> -> vector<16x32xf32>
    %c0_17 = arith.constant 0 : index
    %c0_18 = arith.constant 0 : index
    %c0_19 = arith.constant 0 : index
    %15 = vector.load %arg7[%c0_17, %c0_18, %c0_19] : memref<2x1x32xf32, #tpu.memory_space<vmem>>, vector<1x1x32xf32>
    %16 = vector.shape_cast %15 : vector<1x1x32xf32> to vector<1x32xf32>
    %17 = vector.broadcast %16 : vector<1x32xf32> to vector<16x32xf32>
    %18 = arith.addf %14, %17 : vector<16x32xf32>
    %19 = vector.extract_strided_slice %11 {offsets = [0, 0], sizes = [16, 32], strides = [1, 1]} : vector<16x64xf32> to vector<16x32xf32>
    %20 = vector.extract_strided_slice %11 {offsets = [0, 32], sizes = [16, 32], strides = [1, 1]} : vector<16x64xf32> to vector<16x32xf32>
    %21 = vector.extract_strided_slice %19 {offsets = [0, 0], sizes = [8, 32], strides = [1, 1]} : vector<16x32xf32> to vector<8x32xf32>
    %22 = vector.extract_strided_slice %20 {offsets = [0, 0], sizes = [8, 32], strides = [1, 1]} : vector<16x32xf32> to vector<8x32xf32>
    %23 = vector.extract_strided_slice %18 {offsets = [0, 0], sizes = [8, 32], strides = [1, 1]} : vector<16x32xf32> to vector<8x32xf32>
    %24 = tpu.concatenate %22, %22, %22, %22 in 0 : vector<8x32xf32>, vector<8x32xf32>, vector<8x32xf32>, vector<8x32xf32> -> vector<32x32xf32>
    %25 = arith.mulf %24, %2 : vector<32x32xf32>
    %26 = tpu.concatenate %23, %23, %23, %23 in 0 : vector<8x32xf32>, vector<8x32xf32>, vector<8x32xf32>, vector<8x32xf32> -> vector<32x32xf32>
    %27 = arith.mulf %26, %2 : vector<32x32xf32>
    %cst_20 = arith.constant dense<0.000000e+00> : vector<8x32xf32>
    %28 = tpu.matmul %21, %25, %cst_20 {dimension_numbers = #tpu.dot_dimension_numbers<[1], [1], [0], [0], [0, 0, 1, 0], [], []>} : vector<8x32xf32>, vector<32x32xf32>, vector<8x32xf32> -> vector<8x32xf32>
    %cst_21 = arith.constant dense<0xFF800000> : vector<8xf32>
    %29 = vector.multi_reduction <maximumf>, %28, %cst_21 [1] : vector<8x32xf32> to vector<8xf32>
    %30 = vector.shape_cast %29 : vector<8xf32> to vector<8x1xf32>
    %31 = vector.broadcast %30 : vector<8x1xf32> to vector<8x32xf32>
    %32 = arith.subf %28, %31 : vector<8x32xf32>
    %33 = math.exp %32 : vector<8x32xf32>
    %cst_22 = arith.constant dense<0.000000e+00> : vector<8x32xf32>
    %34 = tpu.matmul %33, %3, %cst_22 {dimension_numbers = #tpu.dot_dimension_numbers<[1], [0], [0], [1], [0, 0, 1, 1], [], []>} : vector<8x32xf32>, vector<32x32xf32>, vector<8x32xf32> -> vector<8x32xf32>
    %35 = arith.divf %33, %34 : vector<8x32xf32>
    %cst_23 = arith.constant dense<0.000000e+00> : vector<8x32xf32>
    %36 = tpu.matmul %35, %27, %cst_23 {dimension_numbers = #tpu.dot_dimension_numbers<[1], [0], [0], [1], [0, 0, 1, 1], [], []>} : vector<8x32xf32>, vector<32x32xf32>, vector<8x32xf32> -> vector<8x32xf32>
    %37 = vector.extract_strided_slice %19 {offsets = [8, 0], sizes = [8, 32], strides = [1, 1]} : vector<16x32xf32> to vector<8x32xf32>
    %38 = vector.extract_strided_slice %20 {offsets = [8, 0], sizes = [8, 32], strides = [1, 1]} : vector<16x32xf32> to vector<8x32xf32>
    %39 = vector.extract_strided_slice %18 {offsets = [8, 0], sizes = [8, 32], strides = [1, 1]} : vector<16x32xf32> to vector<8x32xf32>
    %40 = tpu.concatenate %38, %38, %38, %38 in 0 : vector<8x32xf32>, vector<8x32xf32>, vector<8x32xf32>, vector<8x32xf32> -> vector<32x32xf32>
    %41 = arith.mulf %40, %2 : vector<32x32xf32>
    %42 = tpu.concatenate %39, %39, %39, %39 in 0 : vector<8x32xf32>, vector<8x32xf32>, vector<8x32xf32>, vector<8x32xf32> -> vector<32x32xf32>
    %43 = arith.mulf %42, %2 : vector<32x32xf32>
    %cst_24 = arith.constant dense<0.000000e+00> : vector<8x32xf32>
    %44 = tpu.matmul %37, %41, %cst_24 {dimension_numbers = #tpu.dot_dimension_numbers<[1], [1], [0], [0], [0, 0, 1, 0], [], []>} : vector<8x32xf32>, vector<32x32xf32>, vector<8x32xf32> -> vector<8x32xf32>
    %cst_25 = arith.constant dense<0xFF800000> : vector<8xf32>
    %45 = vector.multi_reduction <maximumf>, %44, %cst_25 [1] : vector<8x32xf32> to vector<8xf32>
    %46 = vector.shape_cast %45 : vector<8xf32> to vector<8x1xf32>
    %47 = vector.broadcast %46 : vector<8x1xf32> to vector<8x32xf32>
    %48 = arith.subf %44, %47 : vector<8x32xf32>
    %49 = math.exp %48 : vector<8x32xf32>
    %cst_26 = arith.constant dense<0.000000e+00> : vector<8x32xf32>
    %50 = tpu.matmul %49, %3, %cst_26 {dimension_numbers = #tpu.dot_dimension_numbers<[1], [0], [0], [1], [0, 0, 1, 1], [], []>} : vector<8x32xf32>, vector<32x32xf32>, vector<8x32xf32> -> vector<8x32xf32>
    %51 = arith.divf %49, %50 : vector<8x32xf32>
    %cst_27 = arith.constant dense<0.000000e+00> : vector<8x32xf32>
    %52 = tpu.matmul %51, %43, %cst_27 {dimension_numbers = #tpu.dot_dimension_numbers<[1], [0], [0], [1], [0, 0, 1, 1], [], []>} : vector<8x32xf32>, vector<32x32xf32>, vector<8x32xf32> -> vector<8x32xf32>
    %53 = tpu.concatenate %36, %52 in 0 : vector<8x32xf32>, vector<8x32xf32> -> vector<16x32xf32>
    %c0_28 = arith.constant 0 : index
    %c0_29 = arith.constant 0 : index
    %c0_30 = arith.constant 0 : index
    %54 = vector.load %arg8[%c0_28, %c0_29, %c0_30] : memref<2x32x32xf32, #tpu.memory_space<vmem>>, vector<1x32x32xf32>
    %55 = vector.shape_cast %54 : vector<1x32x32xf32> to vector<32x32xf32>
    %cst_31 = arith.constant dense<0.000000e+00> : vector<16x32xf32>
    %56 = tpu.matmul %53, %55, %cst_31 {dimension_numbers = #tpu.dot_dimension_numbers<[1], [0], [0], [1], [0, 0, 1, 1], [], []>} : vector<16x32xf32>, vector<32x32xf32>, vector<16x32xf32> -> vector<16x32xf32>
    %c0_32 = arith.constant 0 : index
    %c0_33 = arith.constant 0 : index
    %c0_34 = arith.constant 0 : index
    %57 = vector.load %arg9[%c0_32, %c0_33, %c0_34] : memref<2x1x32xf32, #tpu.memory_space<vmem>>, vector<1x1x32xf32>
    %58 = vector.shape_cast %57 : vector<1x1x32xf32> to vector<1x32xf32>
    %59 = vector.broadcast %58 : vector<1x32xf32> to vector<16x32xf32>
    %60 = arith.addf %56, %59 : vector<16x32xf32>
    %61 = arith.addf %0, %60 : vector<16x32xf32>
    %c0_35 = arith.constant 0 : index
    %c0_36 = arith.constant 0 : index
    %c0_37 = arith.constant 0 : index
    %62 = vector.load %arg10[%c0_35, %c0_36, %c0_37] : memref<2x1x32xf32, #tpu.memory_space<vmem>>, vector<1x1x32xf32>
    %63 = vector.shape_cast %62 : vector<1x1x32xf32> to vector<1x32xf32>
    %c0_38 = arith.constant 0 : index
    %c0_39 = arith.constant 0 : index
    %c0_40 = arith.constant 0 : index
    %64 = vector.load %arg11[%c0_38, %c0_39, %c0_40] : memref<2x1x32xf32, #tpu.memory_space<vmem>>, vector<1x1x32xf32>
    %65 = vector.shape_cast %64 : vector<1x1x32xf32> to vector<1x32xf32>
    %cst_41 = arith.constant dense<0.000000e+00> : vector<16xf32>
    %66 = vector.multi_reduction <add>, %61, %cst_41 [1] : vector<16x32xf32> to vector<16xf32>
    %67 = vector.shape_cast %66 : vector<16xf32> to vector<16x1xf32>
    %cst_42 = arith.constant 3.200000e+01 : f32
    %68 = vector.broadcast %cst_42 : f32 to vector<16x1xf32>
    %69 = arith.divf %67, %68 : vector<16x1xf32>
    %70 = vector.broadcast %69 : vector<16x1xf32> to vector<16x32xf32>
    %71 = arith.subf %61, %70 : vector<16x32xf32>
    %72 = arith.mulf %71, %71 : vector<16x32xf32>
    %cst_43 = arith.constant dense<0.000000e+00> : vector<16xf32>
    %73 = vector.multi_reduction <add>, %72, %cst_43 [1] : vector<16x32xf32> to vector<16xf32>
    %74 = vector.shape_cast %73 : vector<16xf32> to vector<16x1xf32>
    %cst_44 = arith.constant 3.200000e+01 : f32
    %75 = vector.broadcast %cst_44 : f32 to vector<16x1xf32>
    %76 = arith.divf %74, %75 : vector<16x1xf32>
    %77 = vector.broadcast %69 : vector<16x1xf32> to vector<16x32xf32>
    %78 = arith.subf %61, %77 : vector<16x32xf32>
    %cst_45 = arith.constant 9.99999974E-6 : f32
    %79 = vector.broadcast %cst_45 : f32 to vector<16x1xf32>
    %80 = arith.addf %76, %79 : vector<16x1xf32>
    %81 = math.rsqrt %80 : vector<16x1xf32>
    %82 = vector.broadcast %81 : vector<16x1xf32> to vector<16x32xf32>
    %83 = arith.mulf %78, %82 : vector<16x32xf32>
    %84 = vector.broadcast %63 : vector<1x32xf32> to vector<16x32xf32>
    %85 = arith.mulf %83, %84 : vector<16x32xf32>
    %86 = vector.broadcast %65 : vector<1x32xf32> to vector<16x32xf32>
    %87 = arith.addf %85, %86 : vector<16x32xf32>
    %c0_46 = arith.constant 0 : index
    %c0_47 = arith.constant 0 : index
    %c0_48 = arith.constant 0 : index
    %88 = vector.load %arg12[%c0_46, %c0_47, %c0_48] : memref<2x32x64xf32, #tpu.memory_space<vmem>>, vector<1x32x64xf32>
    %89 = vector.shape_cast %88 : vector<1x32x64xf32> to vector<32x64xf32>
    %cst_49 = arith.constant dense<0.000000e+00> : vector<16x64xf32>
    %90 = tpu.matmul %87, %89, %cst_49 {dimension_numbers = #tpu.dot_dimension_numbers<[1], [0], [0], [1], [0, 0, 1, 1], [], []>} : vector<16x32xf32>, vector<32x64xf32>, vector<16x64xf32> -> vector<16x64xf32>
    %c0_50 = arith.constant 0 : index
    %c0_51 = arith.constant 0 : index
    %c0_52 = arith.constant 0 : index
    %91 = vector.load %arg13[%c0_50, %c0_51, %c0_52] : memref<2x1x64xf32, #tpu.memory_space<vmem>>, vector<1x1x64xf32>
    %92 = vector.shape_cast %91 : vector<1x1x64xf32> to vector<1x64xf32>
    %93 = vector.broadcast %92 : vector<1x64xf32> to vector<16x64xf32>
    %94 = arith.addf %90, %93 : vector<16x64xf32>
    %cst_53 = arith.constant 0.000000e+00 : f32
    %95 = vector.broadcast %cst_53 : f32 to vector<16x64xf32>
    %96 = arith.maximumf %94, %95 : vector<16x64xf32>
    %c0_54 = arith.constant 0 : index
    %c0_55 = arith.constant 0 : index
    %c0_56 = arith.constant 0 : index
    %97 = vector.load %arg14[%c0_54, %c0_55, %c0_56] : memref<2x64x32xf32, #tpu.memory_space<vmem>>, vector<1x64x32xf32>
    %98 = vector.shape_cast %97 : vector<1x64x32xf32> to vector<64x32xf32>
    %cst_57 = arith.constant dense<0.000000e+00> : vector<16x32xf32>
    %99 = tpu.matmul %96, %98, %cst_57 {dimension_numbers = #tpu.dot_dimension_numbers<[1], [0], [0], [1], [0, 0, 1, 1], [], []>} : vector<16x64xf32>, vector<64x32xf32>, vector<16x32xf32> -> vector<16x32xf32>
    %c0_58 = arith.constant 0 : index
    %c0_59 = arith.constant 0 : index
    %c0_60 = arith.constant 0 : index
    %100 = vector.load %arg15[%c0_58, %c0_59, %c0_60] : memref<2x1x32xf32, #tpu.memory_space<vmem>>, vector<1x1x32xf32>
    %101 = vector.shape_cast %100 : vector<1x1x32xf32> to vector<1x32xf32>
    %102 = vector.broadcast %101 : vector<1x32xf32> to vector<16x32xf32>
    %103 = arith.addf %99, %102 : vector<16x32xf32>
    %104 = arith.addf %87, %103 : vector<16x32xf32>
    %c0_61 = arith.constant 0 : index
    %c0_62 = arith.constant 0 : index
    %c0_63 = arith.constant 0 : index
    %105 = vector.load %arg16[%c0_61, %c0_62, %c0_63] : memref<2x1x32xf32, #tpu.memory_space<vmem>>, vector<1x1x32xf32>
    %106 = vector.shape_cast %105 : vector<1x1x32xf32> to vector<1x32xf32>
    %c0_64 = arith.constant 0 : index
    %c0_65 = arith.constant 0 : index
    %c0_66 = arith.constant 0 : index
    %107 = vector.load %arg17[%c0_64, %c0_65, %c0_66] : memref<2x1x32xf32, #tpu.memory_space<vmem>>, vector<1x1x32xf32>
    %108 = vector.shape_cast %107 : vector<1x1x32xf32> to vector<1x32xf32>
    %cst_67 = arith.constant dense<0.000000e+00> : vector<16xf32>
    %109 = vector.multi_reduction <add>, %104, %cst_67 [1] : vector<16x32xf32> to vector<16xf32>
    %110 = vector.shape_cast %109 : vector<16xf32> to vector<16x1xf32>
    %cst_68 = arith.constant 3.200000e+01 : f32
    %111 = vector.broadcast %cst_68 : f32 to vector<16x1xf32>
    %112 = arith.divf %110, %111 : vector<16x1xf32>
    %113 = vector.broadcast %112 : vector<16x1xf32> to vector<16x32xf32>
    %114 = arith.subf %104, %113 : vector<16x32xf32>
    %115 = arith.mulf %114, %114 : vector<16x32xf32>
    %cst_69 = arith.constant dense<0.000000e+00> : vector<16xf32>
    %116 = vector.multi_reduction <add>, %115, %cst_69 [1] : vector<16x32xf32> to vector<16xf32>
    %117 = vector.shape_cast %116 : vector<16xf32> to vector<16x1xf32>
    %cst_70 = arith.constant 3.200000e+01 : f32
    %118 = vector.broadcast %cst_70 : f32 to vector<16x1xf32>
    %119 = arith.divf %117, %118 : vector<16x1xf32>
    %120 = vector.broadcast %112 : vector<16x1xf32> to vector<16x32xf32>
    %121 = arith.subf %104, %120 : vector<16x32xf32>
    %cst_71 = arith.constant 9.99999974E-6 : f32
    %122 = vector.broadcast %cst_71 : f32 to vector<16x1xf32>
    %123 = arith.addf %119, %122 : vector<16x1xf32>
    %124 = math.rsqrt %123 : vector<16x1xf32>
    %125 = vector.broadcast %124 : vector<16x1xf32> to vector<16x32xf32>
    %126 = arith.mulf %121, %125 : vector<16x32xf32>
    %127 = vector.broadcast %106 : vector<1x32xf32> to vector<16x32xf32>
    %128 = arith.mulf %126, %127 : vector<16x32xf32>
    %129 = vector.broadcast %108 : vector<1x32xf32> to vector<16x32xf32>
    %130 = arith.addf %128, %129 : vector<16x32xf32>
    %131 = arith.addf %130, %1 : vector<16x32xf32>
    %c1 = arith.constant 1 : index
    %c0_72 = arith.constant 0 : index
    %c0_73 = arith.constant 0 : index
    %132 = vector.load %arg4[%c1, %c0_72, %c0_73] : memref<2x32x64xf32, #tpu.memory_space<vmem>>, vector<1x32x64xf32>
    %133 = vector.shape_cast %132 : vector<1x32x64xf32> to vector<32x64xf32>
    %cst_74 = arith.constant dense<0.000000e+00> : vector<16x64xf32>
    %134 = tpu.matmul %131, %133, %cst_74 {dimension_numbers = #tpu.dot_dimension_numbers<[1], [0], [0], [1], [0, 0, 1, 1], [], []>} : vector<16x32xf32>, vector<32x64xf32>, vector<16x64xf32> -> vector<16x64xf32>
    %c1_75 = arith.constant 1 : index
    %c0_76 = arith.constant 0 : index
    %c0_77 = arith.constant 0 : index
    %135 = vector.load %arg5[%c1_75, %c0_76, %c0_77] : memref<2x1x64xf32, #tpu.memory_space<vmem>>, vector<1x1x64xf32>
    %136 = vector.shape_cast %135 : vector<1x1x64xf32> to vector<1x64xf32>
    %137 = vector.broadcast %136 : vector<1x64xf32> to vector<16x64xf32>
    %138 = arith.addf %134, %137 : vector<16x64xf32>
    %c1_78 = arith.constant 1 : index
    %c0_79 = arith.constant 0 : index
    %c0_80 = arith.constant 0 : index
    %139 = vector.load %arg6[%c1_78, %c0_79, %c0_80] : memref<2x32x32xf32, #tpu.memory_space<vmem>>, vector<1x32x32xf32>
    %140 = vector.shape_cast %139 : vector<1x32x32xf32> to vector<32x32xf32>
    %cst_81 = arith.constant dense<0.000000e+00> : vector<16x32xf32>
    %141 = tpu.matmul %130, %140, %cst_81 {dimension_numbers = #tpu.dot_dimension_numbers<[1], [0], [0], [1], [0, 0, 1, 1], [], []>} : vector<16x32xf32>, vector<32x32xf32>, vector<16x32xf32> -> vector<16x32xf32>
    %c1_82 = arith.constant 1 : index
    %c0_83 = arith.constant 0 : index
    %c0_84 = arith.constant 0 : index
    %142 = vector.load %arg7[%c1_82, %c0_83, %c0_84] : memref<2x1x32xf32, #tpu.memory_space<vmem>>, vector<1x1x32xf32>
    %143 = vector.shape_cast %142 : vector<1x1x32xf32> to vector<1x32xf32>
    %144 = vector.broadcast %143 : vector<1x32xf32> to vector<16x32xf32>
    %145 = arith.addf %141, %144 : vector<16x32xf32>
    %146 = vector.extract_strided_slice %138 {offsets = [0, 0], sizes = [16, 32], strides = [1, 1]} : vector<16x64xf32> to vector<16x32xf32>
    %147 = vector.extract_strided_slice %138 {offsets = [0, 32], sizes = [16, 32], strides = [1, 1]} : vector<16x64xf32> to vector<16x32xf32>
    %148 = vector.extract_strided_slice %146 {offsets = [0, 0], sizes = [8, 32], strides = [1, 1]} : vector<16x32xf32> to vector<8x32xf32>
    %149 = vector.extract_strided_slice %147 {offsets = [0, 0], sizes = [8, 32], strides = [1, 1]} : vector<16x32xf32> to vector<8x32xf32>
    %150 = vector.extract_strided_slice %145 {offsets = [0, 0], sizes = [8, 32], strides = [1, 1]} : vector<16x32xf32> to vector<8x32xf32>
    %151 = tpu.concatenate %149, %149, %149, %149 in 0 : vector<8x32xf32>, vector<8x32xf32>, vector<8x32xf32>, vector<8x32xf32> -> vector<32x32xf32>
    %152 = arith.mulf %151, %2 : vector<32x32xf32>
    %153 = tpu.concatenate %150, %150, %150, %150 in 0 : vector<8x32xf32>, vector<8x32xf32>, vector<8x32xf32>, vector<8x32xf32> -> vector<32x32xf32>
    %154 = arith.mulf %153, %2 : vector<32x32xf32>
    %cst_85 = arith.constant dense<0.000000e+00> : vector<8x32xf32>
    %155 = tpu.matmul %148, %152, %cst_85 {dimension_numbers = #tpu.dot_dimension_numbers<[1], [1], [0], [0], [0, 0, 1, 0], [], []>} : vector<8x32xf32>, vector<32x32xf32>, vector<8x32xf32> -> vector<8x32xf32>
    %cst_86 = arith.constant dense<0xFF800000> : vector<8xf32>
    %156 = vector.multi_reduction <maximumf>, %155, %cst_86 [1] : vector<8x32xf32> to vector<8xf32>
    %157 = vector.shape_cast %156 : vector<8xf32> to vector<8x1xf32>
    %158 = vector.broadcast %157 : vector<8x1xf32> to vector<8x32xf32>
    %159 = arith.subf %155, %158 : vector<8x32xf32>
    %160 = math.exp %159 : vector<8x32xf32>
    %cst_87 = arith.constant dense<0.000000e+00> : vector<8x32xf32>
    %161 = tpu.matmul %160, %3, %cst_87 {dimension_numbers = #tpu.dot_dimension_numbers<[1], [0], [0], [1], [0, 0, 1, 1], [], []>} : vector<8x32xf32>, vector<32x32xf32>, vector<8x32xf32> -> vector<8x32xf32>
    %162 = arith.divf %160, %161 : vector<8x32xf32>
    %cst_88 = arith.constant dense<0.000000e+00> : vector<8x32xf32>
    %163 = tpu.matmul %162, %154, %cst_88 {dimension_numbers = #tpu.dot_dimension_numbers<[1], [0], [0], [1], [0, 0, 1, 1], [], []>} : vector<8x32xf32>, vector<32x32xf32>, vector<8x32xf32> -> vector<8x32xf32>
    %164 = vector.extract_strided_slice %146 {offsets = [8, 0], sizes = [8, 32], strides = [1, 1]} : vector<16x32xf32> to vector<8x32xf32>
    %165 = vector.extract_strided_slice %147 {offsets = [8, 0], sizes = [8, 32], strides = [1, 1]} : vector<16x32xf32> to vector<8x32xf32>
    %166 = vector.extract_strided_slice %145 {offsets = [8, 0], sizes = [8, 32], strides = [1, 1]} : vector<16x32xf32> to vector<8x32xf32>
    %167 = tpu.concatenate %165, %165, %165, %165 in 0 : vector<8x32xf32>, vector<8x32xf32>, vector<8x32xf32>, vector<8x32xf32> -> vector<32x32xf32>
    %168 = arith.mulf %167, %2 : vector<32x32xf32>
    %169 = tpu.concatenate %166, %166, %166, %166 in 0 : vector<8x32xf32>, vector<8x32xf32>, vector<8x32xf32>, vector<8x32xf32> -> vector<32x32xf32>
    %170 = arith.mulf %169, %2 : vector<32x32xf32>
    %cst_89 = arith.constant dense<0.000000e+00> : vector<8x32xf32>
    %171 = tpu.matmul %164, %168, %cst_89 {dimension_numbers = #tpu.dot_dimension_numbers<[1], [1], [0], [0], [0, 0, 1, 0], [], []>} : vector<8x32xf32>, vector<32x32xf32>, vector<8x32xf32> -> vector<8x32xf32>
    %cst_90 = arith.constant dense<0xFF800000> : vector<8xf32>
    %172 = vector.multi_reduction <maximumf>, %171, %cst_90 [1] : vector<8x32xf32> to vector<8xf32>
    %173 = vector.shape_cast %172 : vector<8xf32> to vector<8x1xf32>
    %174 = vector.broadcast %173 : vector<8x1xf32> to vector<8x32xf32>
    %175 = arith.subf %171, %174 : vector<8x32xf32>
    %176 = math.exp %175 : vector<8x32xf32>
    %cst_91 = arith.constant dense<0.000000e+00> : vector<8x32xf32>
    %177 = tpu.matmul %176, %3, %cst_91 {dimension_numbers = #tpu.dot_dimension_numbers<[1], [0], [0], [1], [0, 0, 1, 1], [], []>} : vector<8x32xf32>, vector<32x32xf32>, vector<8x32xf32> -> vector<8x32xf32>
    %178 = arith.divf %176, %177 : vector<8x32xf32>
    %cst_92 = arith.constant dense<0.000000e+00> : vector<8x32xf32>
    %179 = tpu.matmul %178, %170, %cst_92 {dimension_numbers = #tpu.dot_dimension_numbers<[1], [0], [0], [1], [0, 0, 1, 1], [], []>} : vector<8x32xf32>, vector<32x32xf32>, vector<8x32xf32> -> vector<8x32xf32>
    %180 = tpu.concatenate %163, %179 in 0 : vector<8x32xf32>, vector<8x32xf32> -> vector<16x32xf32>
    %c1_93 = arith.constant 1 : index
    %c0_94 = arith.constant 0 : index
    %c0_95 = arith.constant 0 : index
    %181 = vector.load %arg8[%c1_93, %c0_94, %c0_95] : memref<2x32x32xf32, #tpu.memory_space<vmem>>, vector<1x32x32xf32>
    %182 = vector.shape_cast %181 : vector<1x32x32xf32> to vector<32x32xf32>
    %cst_96 = arith.constant dense<0.000000e+00> : vector<16x32xf32>
    %183 = tpu.matmul %180, %182, %cst_96 {dimension_numbers = #tpu.dot_dimension_numbers<[1], [0], [0], [1], [0, 0, 1, 1], [], []>} : vector<16x32xf32>, vector<32x32xf32>, vector<16x32xf32> -> vector<16x32xf32>
    %c1_97 = arith.constant 1 : index
    %c0_98 = arith.constant 0 : index
    %c0_99 = arith.constant 0 : index
    %184 = vector.load %arg9[%c1_97, %c0_98, %c0_99] : memref<2x1x32xf32, #tpu.memory_space<vmem>>, vector<1x1x32xf32>
    %185 = vector.shape_cast %184 : vector<1x1x32xf32> to vector<1x32xf32>
    %186 = vector.broadcast %185 : vector<1x32xf32> to vector<16x32xf32>
    %187 = arith.addf %183, %186 : vector<16x32xf32>
    %188 = arith.addf %130, %187 : vector<16x32xf32>
    %c1_100 = arith.constant 1 : index
    %c0_101 = arith.constant 0 : index
    %c0_102 = arith.constant 0 : index
    %189 = vector.load %arg10[%c1_100, %c0_101, %c0_102] : memref<2x1x32xf32, #tpu.memory_space<vmem>>, vector<1x1x32xf32>
    %190 = vector.shape_cast %189 : vector<1x1x32xf32> to vector<1x32xf32>
    %c1_103 = arith.constant 1 : index
    %c0_104 = arith.constant 0 : index
    %c0_105 = arith.constant 0 : index
    %191 = vector.load %arg11[%c1_103, %c0_104, %c0_105] : memref<2x1x32xf32, #tpu.memory_space<vmem>>, vector<1x1x32xf32>
    %192 = vector.shape_cast %191 : vector<1x1x32xf32> to vector<1x32xf32>
    %cst_106 = arith.constant dense<0.000000e+00> : vector<16xf32>
    %193 = vector.multi_reduction <add>, %188, %cst_106 [1] : vector<16x32xf32> to vector<16xf32>
    %194 = vector.shape_cast %193 : vector<16xf32> to vector<16x1xf32>
    %cst_107 = arith.constant 3.200000e+01 : f32
    %195 = vector.broadcast %cst_107 : f32 to vector<16x1xf32>
    %196 = arith.divf %194, %195 : vector<16x1xf32>
    %197 = vector.broadcast %196 : vector<16x1xf32> to vector<16x32xf32>
    %198 = arith.subf %188, %197 : vector<16x32xf32>
    %199 = arith.mulf %198, %198 : vector<16x32xf32>
    %cst_108 = arith.constant dense<0.000000e+00> : vector<16xf32>
    %200 = vector.multi_reduction <add>, %199, %cst_108 [1] : vector<16x32xf32> to vector<16xf32>
    %201 = vector.shape_cast %200 : vector<16xf32> to vector<16x1xf32>
    %cst_109 = arith.constant 3.200000e+01 : f32
    %202 = vector.broadcast %cst_109 : f32 to vector<16x1xf32>
    %203 = arith.divf %201, %202 : vector<16x1xf32>
    %204 = vector.broadcast %196 : vector<16x1xf32> to vector<16x32xf32>
    %205 = arith.subf %188, %204 : vector<16x32xf32>
    %cst_110 = arith.constant 9.99999974E-6 : f32
    %206 = vector.broadcast %cst_110 : f32 to vector<16x1xf32>
    %207 = arith.addf %203, %206 : vector<16x1xf32>
    %208 = math.rsqrt %207 : vector<16x1xf32>
    %209 = vector.broadcast %208 : vector<16x1xf32> to vector<16x32xf32>
    %210 = arith.mulf %205, %209 : vector<16x32xf32>
    %211 = vector.broadcast %190 : vector<1x32xf32> to vector<16x32xf32>
    %212 = arith.mulf %210, %211 : vector<16x32xf32>
    %213 = vector.broadcast %192 : vector<1x32xf32> to vector<16x32xf32>
    %214 = arith.addf %212, %213 : vector<16x32xf32>
    %c1_111 = arith.constant 1 : index
    %c0_112 = arith.constant 0 : index
    %c0_113 = arith.constant 0 : index
    %215 = vector.load %arg12[%c1_111, %c0_112, %c0_113] : memref<2x32x64xf32, #tpu.memory_space<vmem>>, vector<1x32x64xf32>
    %216 = vector.shape_cast %215 : vector<1x32x64xf32> to vector<32x64xf32>
    %cst_114 = arith.constant dense<0.000000e+00> : vector<16x64xf32>
    %217 = tpu.matmul %214, %216, %cst_114 {dimension_numbers = #tpu.dot_dimension_numbers<[1], [0], [0], [1], [0, 0, 1, 1], [], []>} : vector<16x32xf32>, vector<32x64xf32>, vector<16x64xf32> -> vector<16x64xf32>
    %c1_115 = arith.constant 1 : index
    %c0_116 = arith.constant 0 : index
    %c0_117 = arith.constant 0 : index
    %218 = vector.load %arg13[%c1_115, %c0_116, %c0_117] : memref<2x1x64xf32, #tpu.memory_space<vmem>>, vector<1x1x64xf32>
    %219 = vector.shape_cast %218 : vector<1x1x64xf32> to vector<1x64xf32>
    %220 = vector.broadcast %219 : vector<1x64xf32> to vector<16x64xf32>
    %221 = arith.addf %217, %220 : vector<16x64xf32>
    %cst_118 = arith.constant 0.000000e+00 : f32
    %222 = vector.broadcast %cst_118 : f32 to vector<16x64xf32>
    %223 = arith.maximumf %221, %222 : vector<16x64xf32>
    %c1_119 = arith.constant 1 : index
    %c0_120 = arith.constant 0 : index
    %c0_121 = arith.constant 0 : index
    %224 = vector.load %arg14[%c1_119, %c0_120, %c0_121] : memref<2x64x32xf32, #tpu.memory_space<vmem>>, vector<1x64x32xf32>
    %225 = vector.shape_cast %224 : vector<1x64x32xf32> to vector<64x32xf32>
    %cst_122 = arith.constant dense<0.000000e+00> : vector<16x32xf32>
    %226 = tpu.matmul %223, %225, %cst_122 {dimension_numbers = #tpu.dot_dimension_numbers<[1], [0], [0], [1], [0, 0, 1, 1], [], []>} : vector<16x64xf32>, vector<64x32xf32>, vector<16x32xf32> -> vector<16x32xf32>
    %c1_123 = arith.constant 1 : index
    %c0_124 = arith.constant 0 : index
    %c0_125 = arith.constant 0 : index
    %227 = vector.load %arg15[%c1_123, %c0_124, %c0_125] : memref<2x1x32xf32, #tpu.memory_space<vmem>>, vector<1x1x32xf32>
    %228 = vector.shape_cast %227 : vector<1x1x32xf32> to vector<1x32xf32>
    %229 = vector.broadcast %228 : vector<1x32xf32> to vector<16x32xf32>
    %230 = arith.addf %226, %229 : vector<16x32xf32>
    %231 = arith.addf %214, %230 : vector<16x32xf32>
    %c1_126 = arith.constant 1 : index
    %c0_127 = arith.constant 0 : index
    %c0_128 = arith.constant 0 : index
    %232 = vector.load %arg16[%c1_126, %c0_127, %c0_128] : memref<2x1x32xf32, #tpu.memory_space<vmem>>, vector<1x1x32xf32>
    %233 = vector.shape_cast %232 : vector<1x1x32xf32> to vector<1x32xf32>
    %c1_129 = arith.constant 1 : index
    %c0_130 = arith.constant 0 : index
    %c0_131 = arith.constant 0 : index
    %234 = vector.load %arg17[%c1_129, %c0_130, %c0_131] : memref<2x1x32xf32, #tpu.memory_space<vmem>>, vector<1x1x32xf32>
    %235 = vector.shape_cast %234 : vector<1x1x32xf32> to vector<1x32xf32>
    %cst_132 = arith.constant dense<0.000000e+00> : vector<16xf32>
    %236 = vector.multi_reduction <add>, %231, %cst_132 [1] : vector<16x32xf32> to vector<16xf32>
    %237 = vector.shape_cast %236 : vector<16xf32> to vector<16x1xf32>
    %cst_133 = arith.constant 3.200000e+01 : f32
    %238 = vector.broadcast %cst_133 : f32 to vector<16x1xf32>
    %239 = arith.divf %237, %238 : vector<16x1xf32>
    %240 = vector.broadcast %239 : vector<16x1xf32> to vector<16x32xf32>
    %241 = arith.subf %231, %240 : vector<16x32xf32>
    %242 = arith.mulf %241, %241 : vector<16x32xf32>
    %cst_134 = arith.constant dense<0.000000e+00> : vector<16xf32>
    %243 = vector.multi_reduction <add>, %242, %cst_134 [1] : vector<16x32xf32> to vector<16xf32>
    %244 = vector.shape_cast %243 : vector<16xf32> to vector<16x1xf32>
    %cst_135 = arith.constant 3.200000e+01 : f32
    %245 = vector.broadcast %cst_135 : f32 to vector<16x1xf32>
    %246 = arith.divf %244, %245 : vector<16x1xf32>
    %247 = vector.broadcast %239 : vector<16x1xf32> to vector<16x32xf32>
    %248 = arith.subf %231, %247 : vector<16x32xf32>
    %cst_136 = arith.constant 9.99999974E-6 : f32
    %249 = vector.broadcast %cst_136 : f32 to vector<16x1xf32>
    %250 = arith.addf %246, %249 : vector<16x1xf32>
    %251 = math.rsqrt %250 : vector<16x1xf32>
    %252 = vector.broadcast %251 : vector<16x1xf32> to vector<16x32xf32>
    %253 = arith.mulf %248, %252 : vector<16x32xf32>
    %254 = vector.broadcast %233 : vector<1x32xf32> to vector<16x32xf32>
    %255 = arith.mulf %253, %254 : vector<16x32xf32>
    %256 = vector.broadcast %235 : vector<1x32xf32> to vector<16x32xf32>
    %257 = arith.addf %255, %256 : vector<16x32xf32>
    %c0_137 = arith.constant 0 : index
    %c0_138 = arith.constant 0 : index
    %258 = vector.load %arg18[%c0_137, %c0_138] : memref<1x32xf32, #tpu.memory_space<vmem>>, vector<1x32xf32>
    %c0_139 = arith.constant 0 : index
    %c0_140 = arith.constant 0 : index
    %259 = vector.load %arg19[%c0_139, %c0_140] : memref<1x32xf32, #tpu.memory_space<vmem>>, vector<1x32xf32>
    %cst_141 = arith.constant dense<0.000000e+00> : vector<16xf32>
    %260 = vector.multi_reduction <add>, %257, %cst_141 [1] : vector<16x32xf32> to vector<16xf32>
    %261 = vector.shape_cast %260 : vector<16xf32> to vector<16x1xf32>
    %cst_142 = arith.constant 3.200000e+01 : f32
    %262 = vector.broadcast %cst_142 : f32 to vector<16x1xf32>
    %263 = arith.divf %261, %262 : vector<16x1xf32>
    %264 = vector.broadcast %263 : vector<16x1xf32> to vector<16x32xf32>
    %265 = arith.subf %257, %264 : vector<16x32xf32>
    %266 = arith.mulf %265, %265 : vector<16x32xf32>
    %cst_143 = arith.constant dense<0.000000e+00> : vector<16xf32>
    %267 = vector.multi_reduction <add>, %266, %cst_143 [1] : vector<16x32xf32> to vector<16xf32>
    %268 = vector.shape_cast %267 : vector<16xf32> to vector<16x1xf32>
    %cst_144 = arith.constant 3.200000e+01 : f32
    %269 = vector.broadcast %cst_144 : f32 to vector<16x1xf32>
    %270 = arith.divf %268, %269 : vector<16x1xf32>
    %271 = vector.broadcast %263 : vector<16x1xf32> to vector<16x32xf32>
    %272 = arith.subf %257, %271 : vector<16x32xf32>
    %cst_145 = arith.constant 9.99999974E-6 : f32
    %273 = vector.broadcast %cst_145 : f32 to vector<16x1xf32>
    %274 = arith.addf %270, %273 : vector<16x1xf32>
    %275 = math.rsqrt %274 : vector<16x1xf32>
    %276 = vector.broadcast %275 : vector<16x1xf32> to vector<16x32xf32>
    %277 = arith.mulf %272, %276 : vector<16x32xf32>
    %278 = vector.broadcast %258 : vector<1x32xf32> to vector<16x32xf32>
    %279 = arith.mulf %277, %278 : vector<16x32xf32>
    %280 = vector.broadcast %259 : vector<1x32xf32> to vector<16x32xf32>
    %281 = arith.addf %279, %280 : vector<16x32xf32>
    %c0_146 = arith.constant 0 : index
    %c0_147 = arith.constant 0 : index
    %282 = vector.load %arg20[%c0_146, %c0_147] : memref<16x32xf32, #tpu.memory_space<vmem>>, vector<16x32xf32>
    tpu.vector_store %arg20[%c0_146, %c0_147], %281 {strides = array<i32>} : memref<16x32xf32, #tpu.memory_space<vmem>>, vector<16x32xf32>,
    return
  }
}

</mosaic_0001>

<llo_original>
// kernel: transformer_encoder.1
$region0: #{transformer_encoder.1}
  #allocation0 [shape = 'u32[]', space=smem, size = 0x4, offset = 0x4, fixed_abs, tag = 'smem constant byte address 0x4 - core index']
  #allocation1 [shape = 'u32[144,128]{1,0:T(1,128)}', space=vmem, size = 0x12000, scoped, tag = 'internal scratch']
  %s0 = inlined_call_operand.vmem [shape: f32[16,32], index: 0, kind: input, shape index: {}]
  %s1 = inlined_call_operand.vmem [shape: f32[16,32], index: 1, kind: input, shape index: {}]
  %s2 = inlined_call_operand.vmem [shape: f32[32,32], index: 2, kind: input, shape index: {}, may-alias: {2,3}]
  %s3 = inlined_call_operand.vmem [shape: f32[32,32], index: 3, kind: input, shape index: {}, may-alias: {2,3}]
  %s4 = inlined_call_operand.vmem [shape: f32[2,32,64], index: 4, kind: input, shape index: {}]
  %s5 = inlined_call_operand.vmem [shape: f32[2,1,64], index: 5, kind: input, shape index: {}]
  %s6 = inlined_call_operand.vmem [shape: f32[2,32,32], index: 6, kind: input, shape index: {}]
  %s7 = inlined_call_operand.vmem [shape: f32[2,1,32], index: 7, kind: input, shape index: {}]
  %s8 = inlined_call_operand.vmem [shape: f32[2,32,32], index: 8, kind: input, shape index: {}]
  %s9 = inlined_call_operand.vmem [shape: f32[2,1,32], index: 9, kind: input, shape index: {}]
  %s10 = inlined_call_operand.vmem [shape: f32[2,1,32], index: 10, kind: input, shape index: {}]
  %s11 = inlined_call_operand.vmem [shape: f32[2,1,32], index: 11, kind: input, shape index: {}]
  %s12 = inlined_call_operand.hbm [shape: f32[2,32,64], index: 12, kind: input, shape index: {}]
  %s13 = inlined_call_operand.vmem [shape: f32[2,1,64], index: 13, kind: input, shape index: {}]
  %s14 = inlined_call_operand.vmem [shape: f32[2,64,32], index: 14, kind: input, shape index: {}]
  %s15 = inlined_call_operand.vmem [shape: f32[2,1,32], index: 15, kind: input, shape index: {}]
  %s16 = inlined_call_operand.vmem [shape: f32[2,1,32], index: 16, kind: input, shape index: {}]
  %s17 = inlined_call_operand.vmem [shape: f32[2,1,32], index: 17, kind: input, shape index: {}]
  %s18 = inlined_call_operand.vmem [shape: f32[1,32], index: 18, kind: input, shape index: {}]
  %s19 = inlined_call_operand.vmem [shape: f32[1,32], index: 19, kind: input, shape index: {}]
  %s20 = inlined_call_operand.vmem [shape: f32[16,32], index: 20, kind: output, shape index: {}]
  %s21 = sld [smem:[#allocation0]]
  $region94: #{transformer_encoder.1} parent=0
    _
  %s23 = ssub.s32 1, %s21
  %s24 = scalar_select 0, %s23, %s21
  $region1: #{transformer_encoder.1} parent=0
    #allocation2 [shape = 'u8[32768]{0}', space=vmem, size = 0x8000, scoped, tag = 'input window, operand 12, single buffered']
    #allocation3 [shape = 's32[1]{0}', space=sflag, size = 0x4, scoped, tag = 'scoped memory for transformer_encoder.1']
    %25 = vsyncpa [#allocation3], 0
    // Predicated region
    $region2: #{transformer_encoder.1} parent=1 // pred_check
      _
    $region3: #{transformer_encoder.1} parent=1 // pred_check_branch
      %27 = sbr.rel (0) target = $region5
    $region4: #{transformer_encoder.1} parent=1 // pred_region
      _
    $region5: #{transformer_encoder.1} parent=1 // pred_fallthru
      _
    // Predicated region
    $region6: #{transformer_encoder.1} parent=1 // pred_check
      _
    $region7: #{transformer_encoder.1} parent=1 // pred_check_branch
      %29 = sbr.rel (0) target = $region9
    $region8: #{transformer_encoder.1} parent=1 // pred_region
      _
    $region9: #{transformer_encoder.1} parent=1 // pred_fallthru
      _
    // Predicated region
    $region10: #{transformer_encoder.1} parent=1 // pred_check
      _
    $region11: #{transformer_encoder.1} parent=1 // pred_check_branch
      %31 = sbr.rel (0) target = $region13
    $region12: #{transformer_encoder.1} parent=1 // pred_region
      _
    $region13: #{transformer_encoder.1} parent=1 // pred_fallthru
      _
    // Predicated region
    $region14: #{transformer_encoder.1} parent=1 // pred_check
      _
    $region15: #{transformer_encoder.1} parent=1 // pred_check_branch
      %33 = sbr.rel (0) target = $region17
    $region16: #{transformer_encoder.1} parent=1 // pred_region
      _
    $region17: #{transformer_encoder.1} parent=1 // pred_fallthru
      _
    // Predicated region
    $region18: #{transformer_encoder.1} parent=1 // pred_check
      _
    $region19: #{transformer_encoder.1} parent=1 // pred_check_branch
      %35 = sbr.rel (0) target = $region21
    $region20: #{transformer_encoder.1} parent=1 // pred_region
      _
    $region21: #{transformer_encoder.1} parent=1 // pred_fallthru
      _
    // Predicated region
    $region22: #{transformer_encoder.1} parent=1 // pred_check
      _
    $region23: #{transformer_encoder.1} parent=1 // pred_check_branch
      %37 = sbr.rel (0) target = $region25
    $region24: #{transformer_encoder.1} parent=1 // pred_region
      _
    $region25: #{transformer_encoder.1} parent=1 // pred_fallthru
      _
    // Predicated region
    $region26: #{transformer_encoder.1} parent=1 // pred_check
      _
    $region27: #{transformer_encoder.1} parent=1 // pred_check_branch
      %39 = sbr.rel (0) target = $region29
    $region28: #{transformer_encoder.1} parent=1 // pred_region
      _
    $region29: #{transformer_encoder.1} parent=1 // pred_fallthru
      _
    // Predicated region
    $region30: #{transformer_encoder.1} parent=1 // pred_check
      _
    $region31: #{transformer_encoder.1} parent=1 // pred_check_branch
      %41 = sbr.rel (0) target = $region33
    $region32: #{transformer_encoder.1} parent=1 // pred_region
      _
    $region33: #{transformer_encoder.1} parent=1 // pred_fallthru
      _
    // Predicated region
    $region34: #{transformer_encoder.1} parent=1 // pred_check
      _
    $region35: #{transformer_encoder.1} parent=1 // pred_check_branch
      %43 = sbr.rel (0) target = $region37
    $region36: #{transformer_encoder.1} parent=1 // pred_region
      _
    $region37: #{transformer_encoder.1} parent=1 // pred_fallthru
      _
    // Predicated region
    $region38: #{transformer_encoder.1} parent=1 // pred_check
      _
    $region39: #{transformer_encoder.1} parent=1 // pred_check_branch
      %45 = sbr.rel (0) target = $region41
    $region40: #{transformer_encoder.1} parent=1 // pred_region
      _
    $region41: #{transformer_encoder.1} parent=1 // pred_fallthru
      _
    // Predicated region
    $region42: #{transformer_encoder.1} parent=1 // pred_check
      _
    $region43: #{transformer_encoder.1} parent=1 // pred_check_branch
      %47 = sbr.rel (0) target = $region45
    $region44: #{transformer_encoder.1} parent=1 // pred_region
      _
    $region45: #{transformer_encoder.1} parent=1 // pred_fallthru
      _
    // Predicated region
    $region46: #{transformer_encoder.1} parent=1 // pred_check
      _
    $region47: #{transformer_encoder.1} parent=1 // pred_check_branch
      %49 = sbr.rel (0) target = $region49
    $region48: #{transformer_encoder.1} parent=1 // pred_region
      _
    $region49: #{transformer_encoder.1} parent=1 // pred_fallthru
      _
    // Predicated region
    $region50: #{transformer_encoder.1} parent=1 // pred_check
      _
    $region51: #{transformer_encoder.1} parent=1 // pred_check_branch
      %51 = sbr.rel (0) target = $region53
    $region52: #{transformer_encoder.1} parent=1 // pred_region
      %s53 = ssub.s32 1024, 1024
      %54 = vsyncadd [#allocation3], %s53
      %s55 = sshll.u32 [#allocation2], 4
      %s56 = int_to_ptr.vmem [resolvable:$true] %s55
      %61 = dma.hbm_to_vmem [thread:$0]  %s12, 1024, %s56, [#allocation3], 128, 128, 8
    $region53: #{transformer_encoder.1} parent=1 // pred_fallthru
      _
    // Predicated region
    $region54: #{transformer_encoder.1} parent=1 // pred_check
      _
    $region55: #{transformer_encoder.1} parent=1 // pred_check_branch
      %63 = sbr.rel (0) target = $region57
    $region56: #{transformer_encoder.1} parent=1 // pred_region
      _
    $region57: #{transformer_encoder.1} parent=1 // pred_fallthru
      _
    // Predicated region
    $region58: #{transformer_encoder.1} parent=1 // pred_check
      _
    $region59: #{transformer_encoder.1} parent=1 // pred_check_branch
      %65 = sbr.rel (0) target = $region61
    $region60: #{transformer_encoder.1} parent=1 // pred_region
      _
    $region61: #{transformer_encoder.1} parent=1 // pred_fallthru
      _
    // Predicated region
    $region62: #{transformer_encoder.1} parent=1 // pred_check
      _
    $region63: #{transformer_encoder.1} parent=1 // pred_check_branch
      %67 = sbr.rel (0) target = $region65
    $region64: #{transformer_encoder.1} parent=1 // pred_region
      _
    $region65: #{transformer_encoder.1} parent=1 // pred_fallthru
      _
    // Predicated region
    $region66: #{transformer_encoder.1} parent=1 // pred_check
      _
    $region67: #{transformer_encoder.1} parent=1 // pred_check_branch
      %69 = sbr.rel (0) target = $region69
    $region68: #{transformer_encoder.1} parent=1 // pred_region
      _
    $region69: #{transformer_encoder.1} parent=1 // pred_fallthru
      _
    // Predicated region
    $region70: #{transformer_encoder.1} parent=1 // pred_check
      _
    $region71: #{transformer_encoder.1} parent=1 // pred_check_branch
      %71 = sbr.rel (0) target = $region73
    $region72: #{transformer_encoder.1} parent=1 // pred_region
      _
    $region73: #{transformer_encoder.1} parent=1 // pred_fallthru
      _
    // Predicated region
    $region74: #{transformer_encoder.1} parent=1 // pred_check
      _
    $region75: #{transformer_encoder.1} parent=1 // pred_check_branch
      %73 = sbr.rel (0) target = $region77
    $region76: #{transformer_encoder.1} parent=1 // pred_region
      _
    $region77: #{transformer_encoder.1} parent=1 // pred_fallthru
      _
    // Predicated region
    $region78: #{transformer_encoder.1} parent=1 // pred_check
      _
    $region79: #{transformer_encoder.1} parent=1 // pred_check_branch
      %75 = sbr.rel (0) target = $region81
    $region80: #{transformer_encoder.1} parent=1 // pred_region
      _
    $region81: #{transformer_encoder.1} parent=1 // pred_fallthru
      _
    // Predicated region
    $region82: #{transformer_encoder.1} parent=1 // pred_check
      _
    $region83: #{transformer_encoder.1} parent=1 // pred_check_branch
      %77 = sbr.rel (0) target = $region85
    $region84: #{transformer_encoder.1} parent=1 // pred_region
      %78 = dma.done [#allocation3], 1024
    $region85: #{transformer_encoder.1} parent=1 // pred_fallthru
      _
    %v79 = vld [vmem:[%s0] sm:$0xff]
    %v80 = vld [vmem:[%s0 + $0x8] sm:$0xff]
    %v81 = vld [vmem:[%s1] sm:$0xff]
    %v82 = vld [vmem:[%s1 + $0x8] sm:$0xff]
    %v83 = vld [vmem:[%s2] sm:$0xff]
    %v84 = vld [vmem:[%s2 + $0x8] sm:$0xff]
    %v85 = vld [vmem:[%s2 + $0x10] sm:$0xff]
    %v86 = vld [vmem:[%s2 + $0x18] sm:$0xff]
    %v87 = vld [vmem:[%s3] sm:$0xff]
    %v88 = vld [vmem:[%s3 + $0x8] sm:$0xff]
    %v89 = vld [vmem:[%s3 + $0x10] sm:$0xff]
    %v90 = vld [vmem:[%s3 + $0x18] sm:$0xff]
    %v91 = vadd.f32 %v79, %v81
    %v92 = vadd.f32 %v80, %v82
    %v93 = vld [vmem:[%s4] sm:$0xff]
    %v94 = vld [vmem:[%s4 + $0x8] sm:$0xff]
    %v95 = vld [vmem:[%s4 + $0x10] sm:$0xff]
    %v96 = vld [vmem:[%s4 + $0x18] sm:$0xff]
    %v97 = vld [vmem:[%s5] sm:$0x1]
    %v99 = vlaneseq
    %v100 = vshrl.u32 %v99, 7
    %v101 = vsub.s32 0, %v100
    %v102 = vrot.slane %v97, %v101
    %vm104 = vcmask 261120
    %v106 = vsel %vm104, %v91, 0
    %v109 = vsel %vm104, %v92, 0
    %111 = vmatprep.subr.mxu0 0.0
    %112 = vmatpush1.msra.mxu0 %v93
    %113 = vmatprep.subr.mxu0 0.0
    %114 = vmatpush1.msra.mxu0 %v94
    %115 = vmatprep.subr.mxu0 0.0
    %116 = vmatpush1.msra.mxu0 %v95
    %117 = vmatprep.subr.mxu0 0.0
    %118 = vmatpush1.msra.mxu0 %v96
    %119 = vmatprep.subr.mxu0 0.0
    %120 = vmatpush1.msra.mxu0 0.0
    %121 = vmatprep.subr.mxu0 0.0
    %122 = vmatpush1.msra.mxu0 0.0
    %123 = vmatprep.subr.mxu0 0.0
    %124 = vmatpush1.msra.mxu0 0.0
    %125 = vmatprep.subr.mxu0 0.0
    %126 = vmatpush1.msra.mxu0 0.0
    %127 = vmatprep.subr.mxu0 0.0
    %128 = vmatpush1.msra.mxu0 0.0
    %129 = vmatprep.subr.mxu0 0.0
    %130 = vmatpush1.msra.mxu0 0.0
    %131 = vmatprep.subr.mxu0 0.0
    %132 = vmatpush1.msra.mxu0 0.0
    %133 = vmatprep.subr.mxu0 0.0
    %134 = vmatpush1.msra.mxu0 0.0
    %135 = vmatprep.subr.mxu0 0.0
    %136 = vmatpush1.msra.mxu0 0.0
    %137 = vmatprep.subr.mxu0 0.0
    %138 = vmatpush1.msra.mxu0 0.0
    %139 = vmatprep.subr.mxu0 0.0
    %140 = vmatpush1.msra.mxu0 0.0
    %141 = vmatprep.subr.mxu0 0.0
    %142 = vmatpush1.msra.mxu0 0.0
    %143 = vmatprep.subr.mxu0 0.0
    %144 = vmatpush1.msra.mxu0 0.0
    %145 = vmatprep.subr.mxu0 0.0
    %146 = vmatpush1.msra.mxu0 0.0
    %147 = vmatprep.subr.mxu0 0.0
    %148 = vmatpush1.msra.mxu0 0.0
    %149 = vmatprep.subr.mxu0 0.0
    %150 = vmatpush1.msra.mxu0 0.0
    %151 = vmatprep.subr.mxu0 0.0
    %152 = vmatpush1.msra.mxu0 0.0
    %153 = vmatprep.subr.mxu0 0.0
    %154 = vmatpush1.msra.mxu0 0.0
    %155 = vmatprep.subr.mxu0 0.0
    %156 = vmatpush1.msra.mxu0 0.0
    %157 = vmatprep.subr.mxu0 0.0
    %158 = vmatpush1.msra.mxu0 0.0
    %159 = vmatprep.subr.mxu0 0.0
    %160 = vmatpush1.msra.mxu0 0.0
    %161 = vmatprep.subr.mxu0 0.0
    %162 = vmatpush1.msra.mxu0 0.0
    %163 = vmatprep.subr.mxu0 0.0
    %164 = vmatpush1.msra.mxu0 0.0
    %165 = vmatprep.subr.mxu0 0.0
    %166 = vmatpush1.msra.mxu0 0.0
    %167 = vmatprep.subr.mxu0 0.0
    %168 = vmatpush1.msra.mxu0 0.0
    %169 = vmatprep.subr.mxu0 0.0
    %170 = vmatpush1.msra.mxu0 0.0
    %171 = vmatprep.subr.mxu0 0.0
    %172 = vmatpush1.msra.mxu0 0.0
    %173 = vmatprep.subr.mxu0 0.0
    %174 = vmatpush1.msra.mxu0 0.0
    %175 = vmatprep.mubr.f32.mxu0 0.0
    %176 = vmatmul.mubr.f32.gmra.mrb[0].mxu0 %v106
    %v177 = vpop.f32.mrb[0].mxu0
    %v178 = vadd.f32 %v102, %v177
    %v179 = vpop.f32.mrb[0].mxu0
    %180 = vmatprep.mubr.f32.mxu0 0.0
    %181 = vmatmul.mubr.f32.gmra.mrb[0].mxu0 %v109
    %v182 = vpop.f32.mrb[0].mxu0
    %v183 = vadd.f32 %v102, %v182
    %v184 = vpop.f32.mrb[0].mxu0
    %185 = vdwg.mxu0
    %v186 = vld [vmem:[%s6] sm:$0xff]
    %v187 = vld [vmem:[%s6 + $0x8] sm:$0xff]
    %v188 = vld [vmem:[%s6 + $0x10] sm:$0xff]
    %v189 = vld [vmem:[%s6 + $0x18] sm:$0xff]
    %v190 = vld [vmem:[%s7] sm:$0x1]
    %v192 = vlaneseq
    %v193 = vshrl.u32 %v192, 7
    %v194 = vsub.s32 0, %v193
    %v195 = vrot.slane %v190, %v194
    %v198 = vsel %vm104, %v79, 0
    %v201 = vsel %vm104, %v80, 0
    %203 = vmatprep.subr.mxu0 0.0
    %204 = vmatpush1.msra.mxu0 %v186
    %205 = vmatprep.subr.mxu0 0.0
    %206 = vmatpush1.msra.mxu0 %v187
    %207 = vmatprep.subr.mxu0 0.0
    %208 = vmatpush1.msra.mxu0 %v188
    %209 = vmatprep.subr.mxu0 0.0
    %210 = vmatpush1.msra.mxu0 %v189
    %211 = vmatprep.subr.mxu0 0.0
    %212 = vmatpush1.msra.mxu0 0.0
    %213 = vmatprep.subr.mxu0 0.0
    %214 = vmatpush1.msra.mxu0 0.0
    %215 = vmatprep.subr.mxu0 0.0
    %216 = vmatpush1.msra.mxu0 0.0
    %217 = vmatprep.subr.mxu0 0.0
    %218 = vmatpush1.msra.mxu0 0.0
    %219 = vmatprep.subr.mxu0 0.0
    %220 = vmatpush1.msra.mxu0 0.0
    %221 = vmatprep.subr.mxu0 0.0
    %222 = vmatpush1.msra.mxu0 0.0
    %223 = vmatprep.subr.mxu0 0.0
    %224 = vmatpush1.msra.mxu0 0.0
    %225 = vmatprep.subr.mxu0 0.0
    %226 = vmatpush1.msra.mxu0 0.0
    %227 = vmatprep.subr.mxu0 0.0
    %228 = vmatpush1.msra.mxu0 0.0
    %229 = vmatprep.subr.mxu0 0.0
    %230 = vmatpush1.msra.mxu0 0.0
    %231 = vmatprep.subr.mxu0 0.0
    %232 = vmatpush1.msra.mxu0 0.0
    %233 = vmatprep.subr.mxu0 0.0
    %234 = vmatpush1.msra.mxu0 0.0
    %235 = vmatprep.subr.mxu0 0.0
    %236 = vmatpush1.msra.mxu0 0.0
    %237 = vmatprep.subr.mxu0 0.0
    %238 = vmatpush1.msra.mxu0 0.0
    %239 = vmatprep.subr.mxu0 0.0
    %240 = vmatpush1.msra.mxu0 0.0
    %241 = vmatprep.subr.mxu0 0.0
    %242 = vmatpush1.msra.mxu0 0.0
    %243 = vmatprep.subr.mxu0 0.0
    %244 = vmatpush1.msra.mxu0 0.0
    %245 = vmatprep.subr.mxu0 0.0
    %246 = vmatpush1.msra.mxu0 0.0
    %247 = vmatprep.subr.mxu0 0.0
    %248 = vmatpush1.msra.mxu0 0.0
    %249 = vmatprep.subr.mxu0 0.0
    %250 = vmatpush1.msra.mxu0 0.0
    %251 = vmatprep.subr.mxu0 0.0
    %252 = vmatpush1.msra.mxu0 0.0
    %253 = vmatprep.subr.mxu0 0.0
    %254 = vmatpush1.msra.mxu0 0.0
    %255 = vmatprep.subr.mxu0 0.0
    %256 = vmatpush1.msra.mxu0 0.0
    %257 = vmatprep.subr.mxu0 0.0
    %258 = vmatpush1.msra.mxu0 0.0
    %259 = vmatprep.subr.mxu0 0.0
    %260 = vmatpush1.msra.mxu0 0.0
    %261 = vmatprep.subr.mxu0 0.0
    %262 = vmatpush1.msra.mxu0 0.0
    %263 = vmatprep.subr.mxu0 0.0
    %264 = vmatpush1.msra.mxu0 0.0
    %265 = vmatprep.subr.mxu0 0.0
    %266 = vmatpush1.msra.mxu0 0.0
    %267 = vmatprep.mubr.f32.mxu0 0.0
    %268 = vmatmul.mubr.f32.gmra.mrb[0].mxu0 %v198
    %v269 = vpop.f32.mrb[0].mxu0
    %v270 = vadd.f32 %v195, %v269
    %v271 = vpop.f32.mrb[0].mxu0
    %272 = vmatprep.mubr.f32.mxu0 0.0
    %273 = vmatmul.mubr.f32.gmra.mrb[0].mxu0 %v201
    %v274 = vpop.f32.mrb[0].mxu0
    %v275 = vadd.f32 %v195, %v274
    %v276 = vpop.f32.mrb[0].mxu0
    %277 = vdwg.mxu0
    %282 = vrot.lane.b32.xlu0 %v83, 32
    %v283 = vpop.permute.xlu0 %282
    %284 = vrot.lane.b32.xlu0 %v84, 32
    %v285 = vpop.permute.xlu0 %284
    %286 = vrot.lane.b32.xlu0 %v85, 32
    %v287 = vpop.permute.xlu0 %286
    %288 = vrot.lane.b32.xlu0 %v86, 32
    %v289 = vpop.permute.xlu0 %288
    %v294 = vmul.f32 %v178, %v283
    %v295 = vmul.f32 %v178, %v285
    %v296 = vmul.f32 %v178, %v287
    %v297 = vmul.f32 %v178, %v289
    %v298 = vmul.f32 %v270, %v83
    %v299 = vmul.f32 %v270, %v84
    %v300 = vmul.f32 %v270, %v85
    %v301 = vmul.f32 %v270, %v86
    %306 = vrot.lane.b32.xlu0 %v294, 96
    %v307 = vpop.permute.xlu0 %306
    %308 = vrot.lane.b32.xlu0 %v295, 96
    %v309 = vpop.permute.xlu0 %308
    %310 = vrot.lane.b32.xlu0 %v296, 96
    %v311 = vpop.permute.xlu0 %310
    %312 = vrot.lane.b32.xlu0 %v297, 96
    %v313 = vpop.permute.xlu0 %312
    %v315 = vsel %vm104, %v178, 0
    %v317 = vsel %vm104, %v307, 0
    %v319 = vsel %vm104, %v309, 0
    %v321 = vsel %vm104, %v311, 0
    %v323 = vsel %vm104, %v313, 0
    %325 = vmatprep.subr.mxu0 0.0
    %326 = vmatpush1.xpose.msra.mxu0 %v317
    %327 = vmatprep.subr.mxu0 0.0
    %328 = vmatpush1.xpose.msra.mxu0 %v319
    %329 = vmatprep.subr.mxu0 0.0
    %330 = vmatpush1.xpose.msra.mxu0 %v321
    %331 = vmatprep.subr.mxu0 0.0
    %332 = vmatpush1.xpose.msra.mxu0 %v323
    %333 = vmatprep.subr.mxu0 0.0
    %334 = vmatpush1.xpose.msra.mxu0 0.0
    %335 = vmatprep.subr.mxu0 0.0
    %336 = vmatpush1.xpose.msra.mxu0 0.0
    %337 = vmatprep.subr.mxu0 0.0
    %338 = vmatpush1.xpose.msra.mxu0 0.0
    %339 = vmatprep.subr.mxu0 0.0
    %340 = vmatpush1.xpose.msra.mxu0 0.0
    %341 = vmatprep.subr.mxu0 0.0
    %342 = vmatpush1.xpose.msra.mxu0 0.0
    %343 = vmatprep.subr.mxu0 0.0
    %344 = vmatpush1.xpose.msra.mxu0 0.0
    %345 = vmatprep.subr.mxu0 0.0
    %346 = vmatpush1.xpose.msra.mxu0 0.0
    %347 = vmatprep.subr.mxu0 0.0
    %348 = vmatpush1.xpose.msra.mxu0 0.0
    %349 = vmatprep.subr.mxu0 0.0
    %350 = vmatpush1.xpose.msra.mxu0 0.0
    %351 = vmatprep.subr.mxu0 0.0
    %352 = vmatpush1.xpose.msra.mxu0 0.0
    %353 = vmatprep.subr.mxu0 0.0
    %354 = vmatpush1.xpose.msra.mxu0 0.0
    %355 = vmatprep.subr.mxu0 0.0
    %356 = vmatpush1.xpose.msra.mxu0 0.0
    %357 = vmatprep.subr.mxu0 0.0
    %358 = vmatpush1.xpose.msra.mxu0 0.0
    %359 = vmatprep.subr.mxu0 0.0
    %360 = vmatpush1.xpose.msra.mxu0 0.0
    %361 = vmatprep.subr.mxu0 0.0
    %362 = vmatpush1.xpose.msra.mxu0 0.0
    %363 = vmatprep.subr.mxu0 0.0
    %364 = vmatpush1.xpose.msra.mxu0 0.0
    %365 = vmatprep.subr.mxu0 0.0
    %366 = vmatpush1.xpose.msra.mxu0 0.0
    %367 = vmatprep.subr.mxu0 0.0
    %368 = vmatpush1.xpose.msra.mxu0 0.0
    %369 = vmatprep.subr.mxu0 0.0
    %370 = vmatpush1.xpose.msra.mxu0 0.0
    %371 = vmatprep.subr.mxu0 0.0
    %372 = vmatpush1.xpose.msra.mxu0 0.0
    %373 = vmatprep.subr.mxu0 0.0
    %374 = vmatpush1.xpose.msra.mxu0 0.0
    %375 = vmatprep.subr.mxu0 0.0
    %376 = vmatpush1.xpose.msra.mxu0 0.0
    %377 = vmatprep.subr.mxu0 0.0
    %378 = vmatpush1.xpose.msra.mxu0 0.0
    %379 = vmatprep.subr.mxu0 0.0
    %380 = vmatpush1.xpose.msra.mxu0 0.0
    %381 = vmatprep.subr.mxu0 0.0
    %382 = vmatpush1.xpose.msra.mxu0 0.0
    %383 = vmatprep.subr.mxu0 0.0
    %384 = vmatpush1.xpose.msra.mxu0 0.0
    %385 = vmatprep.subr.mxu0 0.0
    %386 = vmatpush1.xpose.msra.mxu0 0.0
    %387 = vmatprep.subr.mxu0 0.0
    %388 = vmatpush1.xpose.msra.mxu0 0.0
    %389 = vmatprep.mubr.f32.mxu0 0.0
    %390 = vmatmul.mubr.f32.gmra.mrb[0].mxu0 %v315
    %v391 = vpop.f32.mrb[0].mxu0
    %v392 = vadd.f32 0.0, %v391
    %v393 = vpop.f32.mrb[0].mxu0
    %394 = vdwg.mxu0
    %v395 = vsel %vm104, %v392, -inf
    %396 = vmax.xlane.f32.xlu0 %v395
    %v397 = vpop.xlane.xlu0 %396
    %v398 = vsub.f32 %v392, %v397
    %v399 = vmul.f32 %v398, 1.442695
    %v400 = vpow.pop %v399
    %v402 = vsel %vm104, %v400, 0
    %404 = vmatprep.subr.mxu0 0.0
    %405 = vmatpush1.msra.mxu0 %v87
    %406 = vmatprep.subr.mxu0 0.0
    %407 = vmatpush1.msra.mxu0 %v88
    %408 = vmatprep.subr.mxu0 0.0
    %409 = vmatpush1.msra.mxu0 %v89
    %410 = vmatprep.subr.mxu0 0.0
    %411 = vmatpush1.msra.mxu0 %v90
    %412 = vmatprep.subr.mxu0 0.0
    %413 = vmatpush1.msra.mxu0 0.0
    %414 = vmatprep.subr.mxu0 0.0
    %415 = vmatpush1.msra.mxu0 0.0
    %416 = vmatprep.subr.mxu0 0.0
    %417 = vmatpush1.msra.mxu0 0.0
    %418 = vmatprep.subr.mxu0 0.0
    %419 = vmatpush1.msra.mxu0 0.0
    %420 = vmatprep.subr.mxu0 0.0
    %421 = vmatpush1.msra.mxu0 0.0
    %422 = vmatprep.subr.mxu0 0.0
    %423 = vmatpush1.msra.mxu0 0.0
    %424 = vmatprep.subr.mxu0 0.0
    %425 = vmatpush1.msra.mxu0 0.0
    %426 = vmatprep.subr.mxu0 0.0
    %427 = vmatpush1.msra.mxu0 0.0
    %428 = vmatprep.subr.mxu0 0.0
    %429 = vmatpush1.msra.mxu0 0.0
    %430 = vmatprep.subr.mxu0 0.0
    %431 = vmatpush1.msra.mxu0 0.0
    %432 = vmatprep.subr.mxu0 0.0
    %433 = vmatpush1.msra.mxu0 0.0
    %434 = vmatprep.subr.mxu0 0.0
    %435 = vmatpush1.msra.mxu0 0.0
    %436 = vmatprep.subr.mxu0 0.0
    %437 = vmatpush1.msra.mxu0 0.0
    %438 = vmatprep.subr.mxu0 0.0
    %439 = vmatpush1.msra.mxu0 0.0
    %440 = vmatprep.subr.mxu0 0.0
    %441 = vmatpush1.msra.mxu0 0.0
    %442 = vmatprep.subr.mxu0 0.0
    %443 = vmatpush1.msra.mxu0 0.0
    %444 = vmatprep.subr.mxu0 0.0
    %445 = vmatpush1.msra.mxu0 0.0
    %446 = vmatprep.subr.mxu0 0.0
    %447 = vmatpush1.msra.mxu0 0.0
    %448 = vmatprep.subr.mxu0 0.0
    %449 = vmatpush1.msra.mxu0 0.0
    %450 = vmatprep.subr.mxu0 0.0
    %451 = vmatpush1.msra.mxu0 0.0
    %452 = vmatprep.subr.mxu0 0.0
    %453 = vmatpush1.msra.mxu0 0.0
    %454 = vmatprep.subr.mxu0 0.0
    %455 = vmatpush1.msra.mxu0 0.0
    %456 = vmatprep.subr.mxu0 0.0
    %457 = vmatpush1.msra.mxu0 0.0
    %458 = vmatprep.subr.mxu0 0.0
    %459 = vmatpush1.msra.mxu0 0.0
    %460 = vmatprep.subr.mxu0 0.0
    %461 = vmatpush1.msra.mxu0 0.0
    %462 = vmatprep.subr.mxu0 0.0
    %463 = vmatpush1.msra.mxu0 0.0
    %464 = vmatprep.subr.mxu0 0.0
    %465 = vmatpush1.msra.mxu0 0.0
    %466 = vmatprep.subr.mxu0 0.0
    %467 = vmatpush1.msra.mxu0 0.0
    %468 = vmatprep.mubr.f32.mxu0 0.0
    %469 = vmatmul.mubr.f32.gmra.mrb[0].mxu0 %v402
    %v470 = vpop.f32.mrb[0].mxu0
    %v471 = vadd.f32 0.0, %v470
    %v472 = vpop.f32.mrb[0].mxu0
    %473 = vdwg.mxu0
    %v474 = vrcp.pop %v471
    %v475 = vmul.f32 %v400, %v474
    %v477 = vsel %vm104, %v475, 0
    %479 = vmatprep.subr.mxu0 0.0
    %480 = vmatpush1.msra.mxu0 %v298
    %481 = vmatprep.subr.mxu0 0.0
    %482 = vmatpush1.msra.mxu0 %v299
    %483 = vmatprep.subr.mxu0 0.0
    %484 = vmatpush1.msra.mxu0 %v300
    %485 = vmatprep.subr.mxu0 0.0
    %486 = vmatpush1.msra.mxu0 %v301
    %487 = vmatprep.subr.mxu0 0.0
    %488 = vmatpush1.msra.mxu0 0.0
    %489 = vmatprep.subr.mxu0 0.0
    %490 = vmatpush1.msra.mxu0 0.0
    %491 = vmatprep.subr.mxu0 0.0
    %492 = vmatpush1.msra.mxu0 0.0
    %493 = vmatprep.subr.mxu0 0.0
    %494 = vmatpush1.msra.mxu0 0.0
    %495 = vmatprep.subr.mxu0 0.0
    %496 = vmatpush1.msra.mxu0 0.0
    %497 = vmatprep.subr.mxu0 0.0
    %498 = vmatpush1.msra.mxu0 0.0
    %499 = vmatprep.subr.mxu0 0.0
    %500 = vmatpush1.msra.mxu0 0.0
    %501 = vmatprep.subr.mxu0 0.0
    %502 = vmatpush1.msra.mxu0 0.0
    %503 = vmatprep.subr.mxu0 0.0
    %504 = vmatpush1.msra.mxu0 0.0
    %505 = vmatprep.subr.mxu0 0.0
    %506 = vmatpush1.msra.mxu0 0.0
    %507 = vmatprep.subr.mxu0 0.0
    %508 = vmatpush1.msra.mxu0 0.0
    %509 = vmatprep.subr.mxu0 0.0
    %510 = vmatpush1.msra.mxu0 0.0
    %511 = vmatprep.subr.mxu0 0.0
    %512 = vmatpush1.msra.mxu0 0.0
    %513 = vmatprep.subr.mxu0 0.0
    %514 = vmatpush1.msra.mxu0 0.0
    %515 = vmatprep.subr.mxu0 0.0
    %516 = vmatpush1.msra.mxu0 0.0
    %517 = vmatprep.subr.mxu0 0.0
    %518 = vmatpush1.msra.mxu0 0.0
    %519 = vmatprep.subr.mxu0 0.0
    %520 = vmatpush1.msra.mxu0 0.0
    %521 = vmatprep.subr.mxu0 0.0
    %522 = vmatpush1.msra.mxu0 0.0
    %523 = vmatprep.subr.mxu0 0.0
    %524 = vmatpush1.msra.mxu0 0.0
    %525 = vmatprep.subr.mxu0 0.0
    %526 = vmatpush1.msra.mxu0 0.0
    %527 = vmatprep.subr.mxu0 0.0
    %528 = vmatpush1.msra.mxu0 0.0
    %529 = vmatprep.subr.mxu0 0.0
    %530 = vmatpush1.msra.mxu0 0.0
    %531 = vmatprep.subr.mxu0 0.0
    %532 = vmatpush1.msra.mxu0 0.0
    %533 = vmatprep.subr.mxu0 0.0
    %534 = vmatpush1.msra.mxu0 0.0
    %535 = vmatprep.subr.mxu0 0.0
    %536 = vmatpush1.msra.mxu0 0.0
    %537 = vmatprep.subr.mxu0 0.0
    %538 = vmatpush1.msra.mxu0 0.0
    %539 = vmatprep.subr.mxu0 0.0
    %540 = vmatpush1.msra.mxu0 0.0
    %541 = vmatprep.subr.mxu0 0.0
    %542 = vmatpush1.msra.mxu0 0.0
    %543 = vmatprep.mubr.f32.mxu0 0.0
    %544 = vmatmul.mubr.f32.gmra.mrb[0].mxu0 %v477
    %v545 = vpop.f32.mrb[0].mxu0
    %v546 = vadd.f32 0.0, %v545
    %v547 = vpop.f32.mrb[0].mxu0
    %548 = vdwg.mxu0
    %v549 = vmul.f32 %v183, %v283
    %v550 = vmul.f32 %v183, %v285
    %v551 = vmul.f32 %v183, %v287
    %v552 = vmul.f32 %v183, %v289
    %v553 = vmul.f32 %v275, %v83
    %v554 = vmul.f32 %v275, %v84
    %v555 = vmul.f32 %v275, %v85
    %v556 = vmul.f32 %v275, %v86
    %561 = vrot.lane.b32.xlu0 %v549, 96
    %v562 = vpop.permute.xlu0 %561
    %563 = vrot.lane.b32.xlu0 %v550, 96
    %v564 = vpop.permute.xlu0 %563
    %565 = vrot.lane.b32.xlu0 %v551, 96
    %v566 = vpop.permute.xlu0 %565
    %567 = vrot.lane.b32.xlu0 %v552, 96
    %v568 = vpop.permute.xlu0 %567
    %v570 = vsel %vm104, %v183, 0
    %v572 = vsel %vm104, %v562, 0
    %v574 = vsel %vm104, %v564, 0
    %v576 = vsel %vm104, %v566, 0
    %v578 = vsel %vm104, %v568, 0
    %580 = vmatprep.subr.mxu0 0.0
    %581 = vmatpush1.xpose.msra.mxu0 %v572
    %582 = vmatprep.subr.mxu0 0.0
    %583 = vmatpush1.xpose.msra.mxu0 %v574
    %584 = vmatprep.subr.mxu0 0.0
    %585 = vmatpush1.xpose.msra.mxu0 %v576
    %586 = vmatprep.subr.mxu0 0.0
    %587 = vmatpush1.xpose.msra.mxu0 %v578
    %588 = vmatprep.subr.mxu0 0.0
    %589 = vmatpush1.xpose.msra.mxu0 0.0
    %590 = vmatprep.subr.mxu0 0.0
    %591 = vmatpush1.xpose.msra.mxu0 0.0
    %592 = vmatprep.subr.mxu0 0.0
    %593 = vmatpush1.xpose.msra.mxu0 0.0
    %594 = vmatprep.subr.mxu0 0.0
    %595 = vmatpush1.xpose.msra.mxu0 0.0
    %596 = vmatprep.subr.mxu0 0.0
    %597 = vmatpush1.xpose.msra.mxu0 0.0
    %598 = vmatprep.subr.mxu0 0.0
    %599 = vmatpush1.xpose.msra.mxu0 0.0
    %600 = vmatprep.subr.mxu0 0.0
    %601 = vmatpush1.xpose.msra.mxu0 0.0
    %602 = vmatprep.subr.mxu0 0.0
    %603 = vmatpush1.xpose.msra.mxu0 0.0
    %604 = vmatprep.subr.mxu0 0.0
    %605 = vmatpush1.xpose.msra.mxu0 0.0
    %606 = vmatprep.subr.mxu0 0.0
    %607 = vmatpush1.xpose.msra.mxu0 0.0
    %608 = vmatprep.subr.mxu0 0.0
    %609 = vmatpush1.xpose.msra.mxu0 0.0
    %610 = vmatprep.subr.mxu0 0.0
    %611 = vmatpush1.xpose.msra.mxu0 0.0
    %612 = vmatprep.subr.mxu0 0.0
    %613 = vmatpush1.xpose.msra.mxu0 0.0
    %614 = vmatprep.subr.mxu0 0.0
    %615 = vmatpush1.xpose.msra.mxu0 0.0
    %616 = vmatprep.subr.mxu0 0.0
    %617 = vmatpush1.xpose.msra.mxu0 0.0
    %618 = vmatprep.subr.mxu0 0.0
    %619 = vmatpush1.xpose.msra.mxu0 0.0
    %620 = vmatprep.subr.mxu0 0.0
    %621 = vmatpush1.xpose.msra.mxu0 0.0
    %622 = vmatprep.subr.mxu0 0.0
    %623 = vmatpush1.xpose.msra.mxu0 0.0
    %624 = vmatprep.subr.mxu0 0.0
    %625 = vmatpush1.xpose.msra.mxu0 0.0
    %626 = vmatprep.subr.mxu0 0.0
    %627 = vmatpush1.xpose.msra.mxu0 0.0
    %628 = vmatprep.subr.mxu0 0.0
    %629 = vmatpush1.xpose.msra.mxu0 0.0
    %630 = vmatprep.subr.mxu0 0.0
    %631 = vmatpush1.xpose.msra.mxu0 0.0
    %632 = vmatprep.subr.mxu0 0.0
    %633 = vmatpush1.xpose.msra.mxu0 0.0
    %634 = vmatprep.subr.mxu0 0.0
    %635 = vmatpush1.xpose.msra.mxu0 0.0
    %636 = vmatprep.subr.mxu0 0.0
    %637 = vmatpush1.xpose.msra.mxu0 0.0
    %638 = vmatprep.subr.mxu0 0.0
    %639 = vmatpush1.xpose.msra.mxu0 0.0
    %640 = vmatprep.subr.mxu0 0.0
    %641 = vmatpush1.xpose.msra.mxu0 0.0
    %642 = vmatprep.subr.mxu0 0.0
    %643 = vmatpush1.xpose.msra.mxu0 0.0
    %644 = vmatprep.mubr.f32.mxu0 0.0
    %645 = vmatmul.mubr.f32.gmra.mrb[0].mxu0 %v570
    %v646 = vpop.f32.mrb[0].mxu0
    %v647 = vadd.f32 0.0, %v646
    %v648 = vpop.f32.mrb[0].mxu0
    %649 = vdwg.mxu0
    %v650 = vsel %vm104, %v647, -inf
    %651 = vmax.xlane.f32.xlu0 %v650
    %v652 = vpop.xlane.xlu0 %651
    %v653 = vsub.f32 %v647, %v652
    %v654 = vmul.f32 %v653, 1.442695
    %v655 = vpow.pop %v654
    %v657 = vsel %vm104, %v655, 0
    %659 = vmatprep.subr.mxu0 0.0
    %660 = vmatpush1.msra.mxu0 %v87
    %661 = vmatprep.subr.mxu0 0.0
    %662 = vmatpush1.msra.mxu0 %v88
    %663 = vmatprep.subr.mxu0 0.0
    %664 = vmatpush1.msra.mxu0 %v89
    %665 = vmatprep.subr.mxu0 0.0
    %666 = vmatpush1.msra.mxu0 %v90
    %667 = vmatprep.subr.mxu0 0.0
    %668 = vmatpush1.msra.mxu0 0.0
    %669 = vmatprep.subr.mxu0 0.0
    %670 = vmatpush1.msra.mxu0 0.0
    %671 = vmatprep.subr.mxu0 0.0
    %672 = vmatpush1.msra.mxu0 0.0
    %673 = vmatprep.subr.mxu0 0.0
    %674 = vmatpush1.msra.mxu0 0.0
    %675 = vmatprep.subr.mxu0 0.0
    %676 = vmatpush1.msra.mxu0 0.0
    %677 = vmatprep.subr.mxu0 0.0
    %678 = vmatpush1.msra.mxu0 0.0
    %679 = vmatprep.subr.mxu0 0.0
    %680 = vmatpush1.msra.mxu0 0.0
    %681 = vmatprep.subr.mxu0 0.0
    %682 = vmatpush1.msra.mxu0 0.0
    %683 = vmatprep.subr.mxu0 0.0
    %684 = vmatpush1.msra.mxu0 0.0
    %685 = vmatprep.subr.mxu0 0.0
    %686 = vmatpush1.msra.mxu0 0.0
    %687 = vmatprep.subr.mxu0 0.0
    %688 = vmatpush1.msra.mxu0 0.0
    %689 = vmatprep.subr.mxu0 0.0
    %690 = vmatpush1.msra.mxu0 0.0
    %691 = vmatprep.subr.mxu0 0.0
    %692 = vmatpush1.msra.mxu0 0.0
    %693 = vmatprep.subr.mxu0 0.0
    %694 = vmatpush1.msra.mxu0 0.0
    %695 = vmatprep.subr.mxu0 0.0
    %696 = vmatpush1.msra.mxu0 0.0
    %697 = vmatprep.subr.mxu0 0.0
    %698 = vmatpush1.msra.mxu0 0.0
    %699 = vmatprep.subr.mxu0 0.0
    %700 = vmatpush1.msra.mxu0 0.0
    %701 = vmatprep.subr.mxu0 0.0
    %702 = vmatpush1.msra.mxu0 0.0
    %703 = vmatprep.subr.mxu0 0.0
    %704 = vmatpush1.msra.mxu0 0.0
    %705 = vmatprep.subr.mxu0 0.0
    %706 = vmatpush1.msra.mxu0 0.0
    %707 = vmatprep.subr.mxu0 0.0
    %708 = vmatpush1.msra.mxu0 0.0
    %709 = vmatprep.subr.mxu0 0.0
    %710 = vmatpush1.msra.mxu0 0.0
    %711 = vmatprep.subr.mxu0 0.0
    %712 = vmatpush1.msra.mxu0 0.0
    %713 = vmatprep.subr.mxu0 0.0
    %714 = vmatpush1.msra.mxu0 0.0
    %715 = vmatprep.subr.mxu0 0.0
    %716 = vmatpush1.msra.mxu0 0.0
    %717 = vmatprep.subr.mxu0 0.0
    %718 = vmatpush1.msra.mxu0 0.0
    %719 = vmatprep.subr.mxu0 0.0
    %720 = vmatpush1.msra.mxu0 0.0
    %721 = vmatprep.subr.mxu0 0.0
    %722 = vmatpush1.msra.mxu0 0.0
    %723 = vmatprep.mubr.f32.mxu0 0.0
    %724 = vmatmul.mubr.f32.gmra.mrb[0].mxu0 %v657
    %v725 = vpop.f32.mrb[0].mxu0
    %v726 = vadd.f32 0.0, %v725
    %v727 = vpop.f32.mrb[0].mxu0
    %728 = vdwg.mxu0
    %v729 = vrcp.pop %v726
    %v730 = vmul.f32 %v655, %v729
    %v732 = vsel %vm104, %v730, 0
    %734 = vmatprep.subr.mxu0 0.0
    %735 = vmatpush1.msra.mxu0 %v553
    %736 = vmatprep.subr.mxu0 0.0
    %737 = vmatpush1.msra.mxu0 %v554
    %738 = vmatprep.subr.mxu0 0.0
    %739 = vmatpush1.msra.mxu0 %v555
    %740 = vmatprep.subr.mxu0 0.0
    %741 = vmatpush1.msra.mxu0 %v556
    %742 = vmatprep.subr.mxu0 0.0
    %743 = vmatpush1.msra.mxu0 0.0
    %744 = vmatprep.subr.mxu0 0.0
    %745 = vmatpush1.msra.mxu0 0.0
    %746 = vmatprep.subr.mxu0 0.0
    %747 = vmatpush1.msra.mxu0 0.0
    %748 = vmatprep.subr.mxu0 0.0
    %749 = vmatpush1.msra.mxu0 0.0
    %750 = vmatprep.subr.mxu0 0.0
    %751 = vmatpush1.msra.mxu0 0.0
    %752 = vmatprep.subr.mxu0 0.0
    %753 = vmatpush1.msra.mxu0 0.0
    %754 = vmatprep.subr.mxu0 0.0
    %755 = vmatpush1.msra.mxu0 0.0
    %756 = vmatprep.subr.mxu0 0.0
    %757 = vmatpush1.msra.mxu0 0.0
    %758 = vmatprep.subr.mxu0 0.0
    %759 = vmatpush1.msra.mxu0 0.0
    %760 = vmatprep.subr.mxu0 0.0
    %761 = vmatpush1.msra.mxu0 0.0
    %762 = vmatprep.subr.mxu0 0.0
    %763 = vmatpush1.msra.mxu0 0.0
    %764 = vmatprep.subr.mxu0 0.0
    %765 = vmatpush1.msra.mxu0 0.0
    %766 = vmatprep.subr.mxu0 0.0
    %767 = vmatpush1.msra.mxu0 0.0
    %768 = vmatprep.subr.mxu0 0.0
    %769 = vmatpush1.msra.mxu0 0.0
    %770 = vmatprep.subr.mxu0 0.0
    %771 = vmatpush1.msra.mxu0 0.0
    %772 = vmatprep.subr.mxu0 0.0
    %773 = vmatpush1.msra.mxu0 0.0
    %774 = vmatprep.subr.mxu0 0.0
    %775 = vmatpush1.msra.mxu0 0.0
    %776 = vmatprep.subr.mxu0 0.0
    %777 = vmatpush1.msra.mxu0 0.0
    %778 = vmatprep.subr.mxu0 0.0
    %779 = vmatpush1.msra.mxu0 0.0
    %780 = vmatprep.subr.mxu0 0.0
    %781 = vmatpush1.msra.mxu0 0.0
    %782 = vmatprep.subr.mxu0 0.0
    %783 = vmatpush1.msra.mxu0 0.0
    %784 = vmatprep.subr.mxu0 0.0
    %785 = vmatpush1.msra.mxu0 0.0
    %786 = vmatprep.subr.mxu0 0.0
    %787 = vmatpush1.msra.mxu0 0.0
    %788 = vmatprep.subr.mxu0 0.0
    %789 = vmatpush1.msra.mxu0 0.0
    %790 = vmatprep.subr.mxu0 0.0
    %791 = vmatpush1.msra.mxu0 0.0
    %792 = vmatprep.subr.mxu0 0.0
    %793 = vmatpush1.msra.mxu0 0.0
    %794 = vmatprep.subr.mxu0 0.0
    %795 = vmatpush1.msra.mxu0 0.0
    %796 = vmatprep.subr.mxu0 0.0
    %797 = vmatpush1.msra.mxu0 0.0
    %798 = vmatprep.mubr.f32.mxu0 0.0
    %799 = vmatmul.mubr.f32.gmra.mrb[0].mxu0 %v732
    %v800 = vpop.f32.mrb[0].mxu0
    %v801 = vadd.f32 0.0, %v800
    %v802 = vpop.f32.mrb[0].mxu0
    %803 = vdwg.mxu0
    %v804 = vld [vmem:[%s8] sm:$0xff]
    %v805 = vld [vmem:[%s8 + $0x8] sm:$0xff]
    %v806 = vld [vmem:[%s8 + $0x10] sm:$0xff]
    %v807 = vld [vmem:[%s8 + $0x18] sm:$0xff]
    %v808 = vld [vmem:[%s9] sm:$0x1]
    %v810 = vlaneseq
    %v811 = vshrl.u32 %v810, 7
    %v812 = vsub.s32 0, %v811
    %v813 = vrot.slane %v808, %v812
    %v816 = vsel %vm104, %v546, 0
    %v819 = vsel %vm104, %v801, 0
    %821 = vmatprep.subr.mxu0 0.0
    %822 = vmatpush1.msra.mxu0 %v804
    %823 = vmatprep.subr.mxu0 0.0
    %824 = vmatpush1.msra.mxu0 %v805
    %825 = vmatprep.subr.mxu0 0.0
    %826 = vmatpush1.msra.mxu0 %v806
    %827 = vmatprep.subr.mxu0 0.0
    %828 = vmatpush1.msra.mxu0 %v807
    %829 = vmatprep.subr.mxu0 0.0
    %830 = vmatpush1.msra.mxu0 0.0
    %831 = vmatprep.subr.mxu0 0.0
    %832 = vmatpush1.msra.mxu0 0.0
    %833 = vmatprep.subr.mxu0 0.0
    %834 = vmatpush1.msra.mxu0 0.0
    %835 = vmatprep.subr.mxu0 0.0
    %836 = vmatpush1.msra.mxu0 0.0
    %837 = vmatprep.subr.mxu0 0.0
    %838 = vmatpush1.msra.mxu0 0.0
    %839 = vmatprep.subr.mxu0 0.0
    %840 = vmatpush1.msra.mxu0 0.0
    %841 = vmatprep.subr.mxu0 0.0
    %842 = vmatpush1.msra.mxu0 0.0
    %843 = vmatprep.subr.mxu0 0.0
    %844 = vmatpush1.msra.mxu0 0.0
    %845 = vmatprep.subr.mxu0 0.0
    %846 = vmatpush1.msra.mxu0 0.0
    %847 = vmatprep.subr.mxu0 0.0
    %848 = vmatpush1.msra.mxu0 0.0
    %849 = vmatprep.subr.mxu0 0.0
    %850 = vmatpush1.msra.mxu0 0.0
    %851 = vmatprep.subr.mxu0 0.0
    %852 = vmatpush1.msra.mxu0 0.0
    %853 = vmatprep.subr.mxu0 0.0
    %854 = vmatpush1.msra.mxu0 0.0
    %855 = vmatprep.subr.mxu0 0.0
    %856 = vmatpush1.msra.mxu0 0.0
    %857 = vmatprep.subr.mxu0 0.0
    %858 = vmatpush1.msra.mxu0 0.0
    %859 = vmatprep.subr.mxu0 0.0
    %860 = vmatpush1.msra.mxu0 0.0
    %861 = vmatprep.subr.mxu0 0.0
    %862 = vmatpush1.msra.mxu0 0.0
    %863 = vmatprep.subr.mxu0 0.0
    %864 = vmatpush1.msra.mxu0 0.0
    %865 = vmatprep.subr.mxu0 0.0
    %866 = vmatpush1.msra.mxu0 0.0
    %867 = vmatprep.subr.mxu0 0.0
    %868 = vmatpush1.msra.mxu0 0.0
    %869 = vmatprep.subr.mxu0 0.0
    %870 = vmatpush1.msra.mxu0 0.0
    %871 = vmatprep.subr.mxu0 0.0
    %872 = vmatpush1.msra.mxu0 0.0
    %873 = vmatprep.subr.mxu0 0.0
    %874 = vmatpush1.msra.mxu0 0.0
    %875 = vmatprep.subr.mxu0 0.0
    %876 = vmatpush1.msra.mxu0 0.0
    %877 = vmatprep.subr.mxu0 0.0
    %878 = vmatpush1.msra.mxu0 0.0
    %879 = vmatprep.subr.mxu0 0.0
    %880 = vmatpush1.msra.mxu0 0.0
    %881 = vmatprep.subr.mxu0 0.0
    %882 = vmatpush1.msra.mxu0 0.0
    %883 = vmatprep.subr.mxu0 0.0
    %884 = vmatpush1.msra.mxu0 0.0
    %885 = vmatprep.mubr.f32.mxu0 0.0
    %886 = vmatmul.mubr.f32.gmra.mrb[0].mxu0 %v816
    %v887 = vpop.f32.mrb[0].mxu0
    %v888 = vadd.f32 %v813, %v887
    %v889 = vpop.f32.mrb[0].mxu0
    %890 = vmatprep.mubr.f32.mxu0 0.0
    %891 = vmatmul.mubr.f32.gmra.mrb[0].mxu0 %v819
    %v892 = vpop.f32.mrb[0].mxu0
    %v893 = vadd.f32 %v813, %v892
    %v894 = vpop.f32.mrb[0].mxu0
    %895 = vdwg.mxu0
    %v896 = vadd.f32 %v79, %v888
    %v897 = vadd.f32 %v80, %v893
    %v898 = vld [vmem:[%s10] sm:$0x1]
    %v899 = vld [vmem:[%s11] sm:$0x1]
    %v900 = vsel %vm104, %v896, 0.0
    %901 = vadd.xlane.f32.xlu0 %v900
    %v902 = vpop.xlane.xlu0 %901
    %v903 = vsel %vm104, %v897, 0.0
    %904 = vadd.xlane.f32.xlu0 %v903
    %v905 = vpop.xlane.xlu0 %904
    %v906 = vrcp.pop 32.0
    %v907 = vmul.f32 %v902, %v906
    %v908 = vmul.f32 %v905, %v906
    %v909 = vsub.f32 %v896, %v907
    %v910 = vsub.f32 %v897, %v908
    %v911 = vmul.f32 %v909, %v909
    %v912 = vmul.f32 %v910, %v910
    %v913 = vsel %vm104, %v911, 0.0
    %914 = vadd.xlane.f32.xlu0 %v913
    %v915 = vpop.xlane.xlu0 %914
    %v916 = vsel %vm104, %v912, 0.0
    %917 = vadd.xlane.f32.xlu0 %v916
    %v918 = vpop.xlane.xlu0 %917
    %v919 = vmul.f32 %v915, %v906
    %v920 = vmul.f32 %v918, %v906
    %v921 = vadd.f32 %v919, 1e-05
    %v922 = vadd.f32 %v920, 1e-05
    %v923 = vrsqrt.pop %v921
    %v924 = vrsqrt.pop %v922
    %v925 = vmul.f32 %v909, %v923
    %v926 = vmul.f32 %v910, %v924
    %v928 = vlaneseq
    %v929 = vshrl.u32 %v928, 7
    %v930 = vsub.s32 0, %v929
    %v931 = vrot.slane %v898, %v930
    %v933 = vmul.f32 %v925, %v931
    %v934 = vmul.f32 %v926, %v931
    %v936 = vlaneseq
    %v937 = vshrl.u32 %v936, 7
    %v938 = vsub.s32 0, %v937
    %v939 = vrot.slane %v899, %v938
    %v941 = vadd.f32 %v933, %v939
    %v942 = vadd.f32 %v934, %v939
    %v943 = vld [vmem:[#allocation2] sm:$0xff]
    %v944 = vld [vmem:[#allocation2 + $0x8] sm:$0xff]
    %v945 = vld [vmem:[#allocation2 + $0x10] sm:$0xff]
    %v946 = vld [vmem:[#allocation2 + $0x18] sm:$0xff]
    %v947 = vld [vmem:[%s13] sm:$0x1]
    %v949 = vlaneseq
    %v950 = vshrl.u32 %v949, 7
    %v951 = vsub.s32 0, %v950
    %v952 = vrot.slane %v947, %v951
    %v955 = vsel %vm104, %v941, 0
    %v958 = vsel %vm104, %v942, 0
    %960 = vmatprep.subr.mxu0 0.0
    %961 = vmatpush1.msra.mxu0 %v943
    %962 = vmatprep.subr.mxu0 0.0
    %963 = vmatpush1.msra.mxu0 %v944
    %964 = vmatprep.subr.mxu0 0.0
    %965 = vmatpush1.msra.mxu0 %v945
    %966 = vmatprep.subr.mxu0 0.0
    %967 = vmatpush1.msra.mxu0 %v946
    %968 = vmatprep.subr.mxu0 0.0
    %969 = vmatpush1.msra.mxu0 0.0
    %970 = vmatprep.subr.mxu0 0.0
    %971 = vmatpush1.msra.mxu0 0.0
    %972 = vmatprep.subr.mxu0 0.0
    %973 = vmatpush1.msra.mxu0 0.0
    %974 = vmatprep.subr.mxu0 0.0
    %975 = vmatpush1.msra.mxu0 0.0
    %976 = vmatprep.subr.mxu0 0.0
    %977 = vmatpush1.msra.mxu0 0.0
    %978 = vmatprep.subr.mxu0 0.0
    %979 = vmatpush1.msra.mxu0 0.0
    %980 = vmatprep.subr.mxu0 0.0
    %981 = vmatpush1.msra.mxu0 0.0
    %982 = vmatprep.subr.mxu0 0.0
    %983 = vmatpush1.msra.mxu0 0.0
    %984 = vmatprep.subr.mxu0 0.0
    %985 = vmatpush1.msra.mxu0 0.0
    %986 = vmatprep.subr.mxu0 0.0
    %987 = vmatpush1.msra.mxu0 0.0
    %988 = vmatprep.subr.mxu0 0.0
    %989 = vmatpush1.msra.mxu0 0.0
    %990 = vmatprep.subr.mxu0 0.0
    %991 = vmatpush1.msra.mxu0 0.0
    %992 = vmatprep.subr.mxu0 0.0
    %993 = vmatpush1.msra.mxu0 0.0
    %994 = vmatprep.subr.mxu0 0.0
    %995 = vmatpush1.msra.mxu0 0.0
    %996 = vmatprep.subr.mxu0 0.0
    %997 = vmatpush1.msra.mxu0 0.0
    %998 = vmatprep.subr.mxu0 0.0
    %999 = vmatpush1.msra.mxu0 0.0
    %1000 = vmatprep.subr.mxu0 0.0
    %1001 = vmatpush1.msra.mxu0 0.0
    %1002 = vmatprep.subr.mxu0 0.0
    %1003 = vmatpush1.msra.mxu0 0.0
    %1004 = vmatprep.subr.mxu0 0.0
    %1005 = vmatpush1.msra.mxu0 0.0
    %1006 = vmatprep.subr.mxu0 0.0
    %1007 = vmatpush1.msra.mxu0 0.0
    %1008 = vmatprep.subr.mxu0 0.0
    %1009 = vmatpush1.msra.mxu0 0.0
    %1010 = vmatprep.subr.mxu0 0.0
    %1011 = vmatpush1.msra.mxu0 0.0
    %1012 = vmatprep.subr.mxu0 0.0
    %1013 = vmatpush1.msra.mxu0 0.0
    %1014 = vmatprep.subr.mxu0 0.0
    %1015 = vmatpush1.msra.mxu0 0.0
    %1016 = vmatprep.subr.mxu0 0.0
    %1017 = vmatpush1.msra.mxu0 0.0
    %1018 = vmatprep.subr.mxu0 0.0
    %1019 = vmatpush1.msra.mxu0 0.0
    %1020 = vmatprep.subr.mxu0 0.0
    %1021 = vmatpush1.msra.mxu0 0.0
    %1022 = vmatprep.subr.mxu0 0.0
    %1023 = vmatpush1.msra.mxu0 0.0
    %1024 = vmatprep.mubr.f32.mxu0 0.0
    %1025 = vmatmul.mubr.f32.gmra.mrb[0].mxu0 %v955
    %v1026 = vpop.f32.mrb[0].mxu0
    %v1027 = vadd.f32 %v952, %v1026
    %v1028 = vpop.f32.mrb[0].mxu0
    %1029 = vmatprep.mubr.f32.mxu0 0.0
    %1030 = vmatmul.mubr.f32.gmra.mrb[0].mxu0 %v958
    %v1031 = vpop.f32.mrb[0].mxu0
    %v1032 = vadd.f32 %v952, %v1031
    %v1033 = vpop.f32.mrb[0].mxu0
    %1034 = vdwg.mxu0
    %v1035 = vmax.f32 %v1027, 0.0
    %v1036 = vmax.f32 %v1032, 0.0
    %v1037 = vld [vmem:[%s14] sm:$0xff]
    %v1038 = vld [vmem:[%s14 + $0x8] sm:$0xff]
    %v1039 = vld [vmem:[%s14 + $0x10] sm:$0xff]
    %v1040 = vld [vmem:[%s14 + $0x18] sm:$0xff]
    %v1041 = vld [vmem:[%s14 + $0x20] sm:$0xff]
    %v1042 = vld [vmem:[%s14 + $0x28] sm:$0xff]
    %v1043 = vld [vmem:[%s14 + $0x30] sm:$0xff]
    %v1044 = vld [vmem:[%s14 + $0x38] sm:$0xff]
    %v1045 = vld [vmem:[%s15] sm:$0x1]
    %v1047 = vlaneseq
    %v1048 = vshrl.u32 %v1047, 7
    %v1049 = vsub.s32 0, %v1048
    %v1050 = vrot.slane %v1045, %v1049
    %vm1052 = vcmask 523264
    %v1054 = vsel %vm1052, %v1035, 0
    %v1057 = vsel %vm1052, %v1036, 0
    %1059 = vmatprep.subr.mxu0 0.0
    %1060 = vmatpush1.msra.mxu0 %v1037
    %1061 = vmatprep.subr.mxu0 0.0
    %1062 = vmatpush1.msra.mxu0 %v1038
    %1063 = vmatprep.subr.mxu0 0.0
    %1064 = vmatpush1.msra.mxu0 %v1039
    %1065 = vmatprep.subr.mxu0 0.0
    %1066 = vmatpush1.msra.mxu0 %v1040
    %1067 = vmatprep.subr.mxu0 0.0
    %1068 = vmatpush1.msra.mxu0 %v1041
    %1069 = vmatprep.subr.mxu0 0.0
    %1070 = vmatpush1.msra.mxu0 %v1042
    %1071 = vmatprep.subr.mxu0 0.0
    %1072 = vmatpush1.msra.mxu0 %v1043
    %1073 = vmatprep.subr.mxu0 0.0
    %1074 = vmatpush1.msra.mxu0 %v1044
    %1075 = vmatprep.subr.mxu0 0.0
    %1076 = vmatpush1.msra.mxu0 0.0
    %1077 = vmatprep.subr.mxu0 0.0
    %1078 = vmatpush1.msra.mxu0 0.0
    %1079 = vmatprep.subr.mxu0 0.0
    %1080 = vmatpush1.msra.mxu0 0.0
    %1081 = vmatprep.subr.mxu0 0.0
    %1082 = vmatpush1.msra.mxu0 0.0
    %1083 = vmatprep.subr.mxu0 0.0
    %1084 = vmatpush1.msra.mxu0 0.0
    %1085 = vmatprep.subr.mxu0 0.0
    %1086 = vmatpush1.msra.mxu0 0.0
    %1087 = vmatprep.subr.mxu0 0.0
    %1088 = vmatpush1.msra.mxu0 0.0
    %1089 = vmatprep.subr.mxu0 0.0
    %1090 = vmatpush1.msra.mxu0 0.0
    %1091 = vmatprep.subr.mxu0 0.0
    %1092 = vmatpush1.msra.mxu0 0.0
    %1093 = vmatprep.subr.mxu0 0.0
    %1094 = vmatpush1.msra.mxu0 0.0
    %1095 = vmatprep.subr.mxu0 0.0
    %1096 = vmatpush1.msra.mxu0 0.0
    %1097 = vmatprep.subr.mxu0 0.0
    %1098 = vmatpush1.msra.mxu0 0.0
    %1099 = vmatprep.subr.mxu0 0.0
    %1100 = vmatpush1.msra.mxu0 0.0
    %1101 = vmatprep.subr.mxu0 0.0
    %1102 = vmatpush1.msra.mxu0 0.0
    %1103 = vmatprep.subr.mxu0 0.0
    %1104 = vmatpush1.msra.mxu0 0.0
    %1105 = vmatprep.subr.mxu0 0.0
    %1106 = vmatpush1.msra.mxu0 0.0
    %1107 = vmatprep.subr.mxu0 0.0
    %1108 = vmatpush1.msra.mxu0 0.0
    %1109 = vmatprep.subr.mxu0 0.0
    %1110 = vmatpush1.msra.mxu0 0.0
    %1111 = vmatprep.subr.mxu0 0.0
    %1112 = vmatpush1.msra.mxu0 0.0
    %1113 = vmatprep.subr.mxu0 0.0
    %1114 = vmatpush1.msra.mxu0 0.0
    %1115 = vmatprep.subr.mxu0 0.0
    %1116 = vmatpush1.msra.mxu0 0.0
    %1117 = vmatprep.subr.mxu0 0.0
    %1118 = vmatpush1.msra.mxu0 0.0
    %1119 = vmatprep.subr.mxu0 0.0
    %1120 = vmatpush1.msra.mxu0 0.0
    %1121 = vmatprep.subr.mxu0 0.0
    %1122 = vmatpush1.msra.mxu0 0.0
    %1123 = vmatprep.mubr.f32.mxu0 0.0
    %1124 = vmatmul.mubr.f32.gmra.mrb[0].mxu0 %v1054
    %v1125 = vpop.f32.mrb[0].mxu0
    %v1126 = vadd.f32 %v1050, %v1125
    %v1127 = vpop.f32.mrb[0].mxu0
    %1128 = vmatprep.mubr.f32.mxu0 0.0
    %1129 = vmatmul.mubr.f32.gmra.mrb[0].mxu0 %v1057
    %v1130 = vpop.f32.mrb[0].mxu0
    %v1131 = vadd.f32 %v1050, %v1130
    %v1132 = vpop.f32.mrb[0].mxu0
    %1133 = vdwg.mxu0
    %v1134 = vadd.f32 %v941, %v1126
    %v1135 = vadd.f32 %v942, %v1131
    %v1136 = vld [vmem:[%s16] sm:$0x1]
    %v1137 = vld [vmem:[%s17] sm:$0x1]
    %v1138 = vsel %vm104, %v1134, 0.0
    %1139 = vadd.xlane.f32.xlu0 %v1138
    %v1140 = vpop.xlane.xlu0 %1139
    %v1141 = vsel %vm104, %v1135, 0.0
    %1142 = vadd.xlane.f32.xlu0 %v1141
    %v1143 = vpop.xlane.xlu0 %1142
    %v1144 = vmul.f32 %v1140, %v906
    %v1145 = vmul.f32 %v1143, %v906
    %v1146 = vsub.f32 %v1134, %v1144
    %v1147 = vsub.f32 %v1135, %v1145
    %v1148 = vmul.f32 %v1146, %v1146
    %v1149 = vmul.f32 %v1147, %v1147
    %v1150 = vsel %vm104, %v1148, 0.0
    %1151 = vadd.xlane.f32.xlu0 %v1150
    %v1152 = vpop.xlane.xlu0 %1151
    %v1153 = vsel %vm104, %v1149, 0.0
    %1154 = vadd.xlane.f32.xlu0 %v1153
    %v1155 = vpop.xlane.xlu0 %1154
    %v1156 = vmul.f32 %v1152, %v906
    %v1157 = vmul.f32 %v1155, %v906
    %v1158 = vadd.f32 %v1156, 1e-05
    %v1159 = vadd.f32 %v1157, 1e-05
    %v1160 = vrsqrt.pop %v1158
    %v1161 = vrsqrt.pop %v1159
    %v1162 = vmul.f32 %v1146, %v1160
    %v1163 = vmul.f32 %v1147, %v1161
    %v1165 = vlaneseq
    %v1166 = vshrl.u32 %v1165, 7
    %v1167 = vsub.s32 0, %v1166
    %v1168 = vrot.slane %v1136, %v1167
    %v1170 = vmul.f32 %v1162, %v1168
    %v1171 = vmul.f32 %v1163, %v1168
    %v1173 = vlaneseq
    %v1174 = vshrl.u32 %v1173, 7
    %v1175 = vsub.s32 0, %v1174
    %v1176 = vrot.slane %v1137, %v1175
    %v1178 = vadd.f32 %v1170, %v1176
    %v1179 = vadd.f32 %v1171, %v1176
    %v1180 = vadd.f32 %v1178, %v81
    %v1181 = vadd.f32 %v1179, %v82
    %s1182 = scalar_lea.vmem %s4, 32
    %v1183 = vld [vmem:[%s1182] sm:$0xff]
    %v1184 = vld [vmem:[%s1182 + $0x8] sm:$0xff]
    %v1185 = vld [vmem:[%s1182 + $0x10] sm:$0xff]
    %v1186 = vld [vmem:[%s1182 + $0x18] sm:$0xff]
    %s1187 = scalar_lea.vmem %s5, 1
    %v1188 = vld [vmem:[%s1187] sm:$0x1]
    %v1190 = vlaneseq
    %v1191 = vshrl.u32 %v1190, 7
    %v1192 = vsub.s32 0, %v1191
    %v1193 = vrot.slane %v1188, %v1192
    %v1196 = vsel %vm104, %v1180, 0
    %v1199 = vsel %vm104, %v1181, 0
    %1201 = vmatprep.subr.mxu0 0.0
    %1202 = vmatpush1.msra.mxu0 %v1183
    %1203 = vmatprep.subr.mxu0 0.0
    %1204 = vmatpush1.msra.mxu0 %v1184
    %1205 = vmatprep.subr.mxu0 0.0
    %1206 = vmatpush1.msra.mxu0 %v1185
    %1207 = vmatprep.subr.mxu0 0.0
    %1208 = vmatpush1.msra.mxu0 %v1186
    %1209 = vmatprep.subr.mxu0 0.0
    %1210 = vmatpush1.msra.mxu0 0.0
    %1211 = vmatprep.subr.mxu0 0.0
    %1212 = vmatpush1.msra.mxu0 0.0
    %1213 = vmatprep.subr.mxu0 0.0
    %1214 = vmatpush1.msra.mxu0 0.0
    %1215 = vmatprep.subr.mxu0 0.0
    %1216 = vmatpush1.msra.mxu0 0.0
    %1217 = vmatprep.subr.mxu0 0.0
    %1218 = vmatpush1.msra.mxu0 0.0
    %1219 = vmatprep.subr.mxu0 0.0
    %1220 = vmatpush1.msra.mxu0 0.0
    %1221 = vmatprep.subr.mxu0 0.0
    %1222 = vmatpush1.msra.mxu0 0.0
    %1223 = vmatprep.subr.mxu0 0.0
    %1224 = vmatpush1.msra.mxu0 0.0
    %1225 = vmatprep.subr.mxu0 0.0
    %1226 = vmatpush1.msra.mxu0 0.0
    %1227 = vmatprep.subr.mxu0 0.0
    %1228 = vmatpush1.msra.mxu0 0.0
    %1229 = vmatprep.subr.mxu0 0.0
    %1230 = vmatpush1.msra.mxu0 0.0
    %1231 = vmatprep.subr.mxu0 0.0
    %1232 = vmatpush1.msra.mxu0 0.0
    %1233 = vmatprep.subr.mxu0 0.0
    %1234 = vmatpush1.msra.mxu0 0.0
    %1235 = vmatprep.subr.mxu0 0.0
    %1236 = vmatpush1.msra.mxu0 0.0
    %1237 = vmatprep.subr.mxu0 0.0
    %1238 = vmatpush1.msra.mxu0 0.0
    %1239 = vmatprep.subr.mxu0 0.0
    %1240 = vmatpush1.msra.mxu0 0.0
    %1241 = vmatprep.subr.mxu0 0.0
    %1242 = vmatpush1.msra.mxu0 0.0
    %1243 = vmatprep.subr.mxu0 0.0
    %1244 = vmatpush1.msra.mxu0 0.0
    %1245 = vmatprep.subr.mxu0 0.0
    %1246 = vmatpush1.msra.mxu0 0.0
    %1247 = vmatprep.subr.mxu0 0.0
    %1248 = vmatpush1.msra.mxu0 0.0
    %1249 = vmatprep.subr.mxu0 0.0
    %1250 = vmatpush1.msra.mxu0 0.0
    %1251 = vmatprep.subr.mxu0 0.0
    %1252 = vmatpush1.msra.mxu0 0.0
    %1253 = vmatprep.subr.mxu0 0.0
    %1254 = vmatpush1.msra.mxu0 0.0
    %1255 = vmatprep.subr.mxu0 0.0
    %1256 = vmatpush1.msra.mxu0 0.0
    %1257 = vmatprep.subr.mxu0 0.0
    %1258 = vmatpush1.msra.mxu0 0.0
    %1259 = vmatprep.subr.mxu0 0.0
    %1260 = vmatpush1.msra.mxu0 0.0
    %1261 = vmatprep.subr.mxu0 0.0
    %1262 = vmatpush1.msra.mxu0 0.0
    %1263 = vmatprep.subr.mxu0 0.0
    %1264 = vmatpush1.msra.mxu0 0.0
    %1265 = vmatprep.mubr.f32.mxu0 0.0
    %1266 = vmatmul.mubr.f32.gmra.mrb[0].mxu0 %v1196
    %v1267 = vpop.f32.mrb[0].mxu0
    %v1268 = vadd.f32 %v1193, %v1267
    %v1269 = vpop.f32.mrb[0].mxu0
    %1270 = vmatprep.mubr.f32.mxu0 0.0
    %1271 = vmatmul.mubr.f32.gmra.mrb[0].mxu0 %v1199
    %v1272 = vpop.f32.mrb[0].mxu0
    %v1273 = vadd.f32 %v1193, %v1272
    %v1274 = vpop.f32.mrb[0].mxu0
    %1275 = vdwg.mxu0
    %s1276 = scalar_lea.vmem %s6, 32
    %v1277 = vld [vmem:[%s1276] sm:$0xff]
    %v1278 = vld [vmem:[%s1276 + $0x8] sm:$0xff]
    %v1279 = vld [vmem:[%s1276 + $0x10] sm:$0xff]
    %v1280 = vld [vmem:[%s1276 + $0x18] sm:$0xff]
    %s1281 = scalar_lea.vmem %s7, 1
    %v1282 = vld [vmem:[%s1281] sm:$0x1]
    %v1284 = vlaneseq
    %v1285 = vshrl.u32 %v1284, 7
    %v1286 = vsub.s32 0, %v1285
    %v1287 = vrot.slane %v1282, %v1286
    %v1290 = vsel %vm104, %v1178, 0
    %v1293 = vsel %vm104, %v1179, 0
    %1295 = vmatprep.subr.mxu0 0.0
    %1296 = vmatpush1.msra.mxu0 %v1277
    %1297 = vmatprep.subr.mxu0 0.0
    %1298 = vmatpush1.msra.mxu0 %v1278
    %1299 = vmatprep.subr.mxu0 0.0
    %1300 = vmatpush1.msra.mxu0 %v1279
    %1301 = vmatprep.subr.mxu0 0.0
    %1302 = vmatpush1.msra.mxu0 %v1280
    %1303 = vmatprep.subr.mxu0 0.0
    %1304 = vmatpush1.msra.mxu0 0.0
    %1305 = vmatprep.subr.mxu0 0.0
    %1306 = vmatpush1.msra.mxu0 0.0
    %1307 = vmatprep.subr.mxu0 0.0
    %1308 = vmatpush1.msra.mxu0 0.0
    %1309 = vmatprep.subr.mxu0 0.0
    %1310 = vmatpush1.msra.mxu0 0.0
    %1311 = vmatprep.subr.mxu0 0.0
    %1312 = vmatpush1.msra.mxu0 0.0
    %1313 = vmatprep.subr.mxu0 0.0
    %1314 = vmatpush1.msra.mxu0 0.0
    %1315 = vmatprep.subr.mxu0 0.0
    %1316 = vmatpush1.msra.mxu0 0.0
    %1317 = vmatprep.subr.mxu0 0.0
    %1318 = vmatpush1.msra.mxu0 0.0
    %1319 = vmatprep.subr.mxu0 0.0
    %1320 = vmatpush1.msra.mxu0 0.0
    %1321 = vmatprep.subr.mxu0 0.0
    %1322 = vmatpush1.msra.mxu0 0.0
    %1323 = vmatprep.subr.mxu0 0.0
    %1324 = vmatpush1.msra.mxu0 0.0
    %1325 = vmatprep.subr.mxu0 0.0
    %1326 = vmatpush1.msra.mxu0 0.0
    %1327 = vmatprep.subr.mxu0 0.0
    %1328 = vmatpush1.msra.mxu0 0.0
    %1329 = vmatprep.subr.mxu0 0.0
    %1330 = vmatpush1.msra.mxu0 0.0
    %1331 = vmatprep.subr.mxu0 0.0
    %1332 = vmatpush1.msra.mxu0 0.0
    %1333 = vmatprep.subr.mxu0 0.0
    %1334 = vmatpush1.msra.mxu0 0.0
    %1335 = vmatprep.subr.mxu0 0.0
    %1336 = vmatpush1.msra.mxu0 0.0
    %1337 = vmatprep.subr.mxu0 0.0
    %1338 = vmatpush1.msra.mxu0 0.0
    %1339 = vmatprep.subr.mxu0 0.0
    %1340 = vmatpush1.msra.mxu0 0.0
    %1341 = vmatprep.subr.mxu0 0.0
    %1342 = vmatpush1.msra.mxu0 0.0
    %1343 = vmatprep.subr.mxu0 0.0
    %1344 = vmatpush1.msra.mxu0 0.0
    %1345 = vmatprep.subr.mxu0 0.0
    %1346 = vmatpush1.msra.mxu0 0.0
    %1347 = vmatprep.subr.mxu0 0.0
    %1348 = vmatpush1.msra.mxu0 0.0
    %1349 = vmatprep.subr.mxu0 0.0
    %1350 = vmatpush1.msra.mxu0 0.0
    %1351 = vmatprep.subr.mxu0 0.0
    %1352 = vmatpush1.msra.mxu0 0.0
    %1353 = vmatprep.subr.mxu0 0.0
    %1354 = vmatpush1.msra.mxu0 0.0
    %1355 = vmatprep.subr.mxu0 0.0
    %1356 = vmatpush1.msra.mxu0 0.0
    %1357 = vmatprep.subr.mxu0 0.0
    %1358 = vmatpush1.msra.mxu0 0.0
    %1359 = vmatprep.mubr.f32.mxu0 0.0
    %1360 = vmatmul.mubr.f32.gmra.mrb[0].mxu0 %v1290
    %v1361 = vpop.f32.mrb[0].mxu0
    %v1362 = vadd.f32 %v1287, %v1361
    %v1363 = vpop.f32.mrb[0].mxu0
    %1364 = vmatprep.mubr.f32.mxu0 0.0
    %1365 = vmatmul.mubr.f32.gmra.mrb[0].mxu0 %v1293
    %v1366 = vpop.f32.mrb[0].mxu0
    %v1367 = vadd.f32 %v1287, %v1366
    %v1368 = vpop.f32.mrb[0].mxu0
    %1369 = vdwg.mxu0
    %v1370 = vmul.f32 %v1268, %v283
    %v1371 = vmul.f32 %v1268, %v285
    %v1372 = vmul.f32 %v1268, %v287
    %v1373 = vmul.f32 %v1268, %v289
    %v1374 = vmul.f32 %v1362, %v83
    %v1375 = vmul.f32 %v1362, %v84
    %v1376 = vmul.f32 %v1362, %v85
    %v1377 = vmul.f32 %v1362, %v86
    %1382 = vrot.lane.b32.xlu0 %v1370, 96
    %v1383 = vpop.permute.xlu0 %1382
    %1384 = vrot.lane.b32.xlu0 %v1371, 96
    %v1385 = vpop.permute.xlu0 %1384
    %1386 = vrot.lane.b32.xlu0 %v1372, 96
    %v1387 = vpop.permute.xlu0 %1386
    %1388 = vrot.lane.b32.xlu0 %v1373, 96
    %v1389 = vpop.permute.xlu0 %1388
    %v1391 = vsel %vm104, %v1268, 0
    %v1393 = vsel %vm104, %v1383, 0
    %v1395 = vsel %vm104, %v1385, 0
    %v1397 = vsel %vm104, %v1387, 0
    %v1399 = vsel %vm104, %v1389, 0
    %1401 = vmatprep.subr.mxu0 0.0
    %1402 = vmatpush1.xpose.msra.mxu0 %v1393
    %1403 = vmatprep.subr.mxu0 0.0
    %1404 = vmatpush1.xpose.msra.mxu0 %v1395
    %1405 = vmatprep.subr.mxu0 0.0
    %1406 = vmatpush1.xpose.msra.mxu0 %v1397
    %1407 = vmatprep.subr.mxu0 0.0
    %1408 = vmatpush1.xpose.msra.mxu0 %v1399
    %1409 = vmatprep.subr.mxu0 0.0
    %1410 = vmatpush1.xpose.msra.mxu0 0.0
    %1411 = vmatprep.subr.mxu0 0.0
    %1412 = vmatpush1.xpose.msra.mxu0 0.0
    %1413 = vmatprep.subr.mxu0 0.0
    %1414 = vmatpush1.xpose.msra.mxu0 0.0
    %1415 = vmatprep.subr.mxu0 0.0
    %1416 = vmatpush1.xpose.msra.mxu0 0.0
    %1417 = vmatprep.subr.mxu0 0.0
    %1418 = vmatpush1.xpose.msra.mxu0 0.0
    %1419 = vmatprep.subr.mxu0 0.0
    %1420 = vmatpush1.xpose.msra.mxu0 0.0
    %1421 = vmatprep.subr.mxu0 0.0
    %1422 = vmatpush1.xpose.msra.mxu0 0.0
    %1423 = vmatprep.subr.mxu0 0.0
    %1424 = vmatpush1.xpose.msra.mxu0 0.0
    %1425 = vmatprep.subr.mxu0 0.0
    %1426 = vmatpush1.xpose.msra.mxu0 0.0
    %1427 = vmatprep.subr.mxu0 0.0
    %1428 = vmatpush1.xpose.msra.mxu0 0.0
    %1429 = vmatprep.subr.mxu0 0.0
    %1430 = vmatpush1.xpose.msra.mxu0 0.0
    %1431 = vmatprep.subr.mxu0 0.0
    %1432 = vmatpush1.xpose.msra.mxu0 0.0
    %1433 = vmatprep.subr.mxu0 0.0
    %1434 = vmatpush1.xpose.msra.mxu0 0.0
    %1435 = vmatprep.subr.mxu0 0.0
    %1436 = vmatpush1.xpose.msra.mxu0 0.0
    %1437 = vmatprep.subr.mxu0 0.0
    %1438 = vmatpush1.xpose.msra.mxu0 0.0
    %1439 = vmatprep.subr.mxu0 0.0
    %1440 = vmatpush1.xpose.msra.mxu0 0.0
    %1441 = vmatprep.subr.mxu0 0.0
    %1442 = vmatpush1.xpose.msra.mxu0 0.0
    %1443 = vmatprep.subr.mxu0 0.0
    %1444 = vmatpush1.xpose.msra.mxu0 0.0
    %1445 = vmatprep.subr.mxu0 0.0
    %1446 = vmatpush1.xpose.msra.mxu0 0.0
    %1447 = vmatprep.subr.mxu0 0.0
    %1448 = vmatpush1.xpose.msra.mxu0 0.0
    %1449 = vmatprep.subr.mxu0 0.0
    %1450 = vmatpush1.xpose.msra.mxu0 0.0
    %1451 = vmatprep.subr.mxu0 0.0
    %1452 = vmatpush1.xpose.msra.mxu0 0.0
    %1453 = vmatprep.subr.mxu0 0.0
    %1454 = vmatpush1.xpose.msra.mxu0 0.0
    %1455 = vmatprep.subr.mxu0 0.0
    %1456 = vmatpush1.xpose.msra.mxu0 0.0
    %1457 = vmatprep.subr.mxu0 0.0
    %1458 = vmatpush1.xpose.msra.mxu0 0.0
    %1459 = vmatprep.subr.mxu0 0.0
    %1460 = vmatpush1.xpose.msra.mxu0 0.0
    %1461 = vmatprep.subr.mxu0 0.0
    %1462 = vmatpush1.xpose.msra.mxu0 0.0
    %1463 = vmatprep.subr.mxu0 0.0
    %1464 = vmatpush1.xpose.msra.mxu0 0.0
    %1465 = vmatprep.mubr.f32.mxu0 0.0
    %1466 = vmatmul.mubr.f32.gmra.mrb[0].mxu0 %v1391
    %v1467 = vpop.f32.mrb[0].mxu0
    %v1468 = vadd.f32 0.0, %v1467
    %v1469 = vpop.f32.mrb[0].mxu0
    %1470 = vdwg.mxu0
    %v1471 = vsel %vm104, %v1468, -inf
    %1472 = vmax.xlane.f32.xlu0 %v1471
    %v1473 = vpop.xlane.xlu0 %1472
    %v1474 = vsub.f32 %v1468, %v1473
    %v1475 = vmul.f32 %v1474, 1.442695
    %v1476 = vpow.pop %v1475
    %v1478 = vsel %vm104, %v1476, 0
    %1480 = vmatprep.subr.mxu0 0.0
    %1481 = vmatpush1.msra.mxu0 %v87
    %1482 = vmatprep.subr.mxu0 0.0
    %1483 = vmatpush1.msra.mxu0 %v88
    %1484 = vmatprep.subr.mxu0 0.0
    %1485 = vmatpush1.msra.mxu0 %v89
    %1486 = vmatprep.subr.mxu0 0.0
    %1487 = vmatpush1.msra.mxu0 %v90
    %1488 = vmatprep.subr.mxu0 0.0
    %1489 = vmatpush1.msra.mxu0 0.0
    %1490 = vmatprep.subr.mxu0 0.0
    %1491 = vmatpush1.msra.mxu0 0.0
    %1492 = vmatprep.subr.mxu0 0.0
    %1493 = vmatpush1.msra.mxu0 0.0
    %1494 = vmatprep.subr.mxu0 0.0
    %1495 = vmatpush1.msra.mxu0 0.0
    %1496 = vmatprep.subr.mxu0 0.0
    %1497 = vmatpush1.msra.mxu0 0.0
    %1498 = vmatprep.subr.mxu0 0.0
    %1499 = vmatpush1.msra.mxu0 0.0
    %1500 = vmatprep.subr.mxu0 0.0
    %1501 = vmatpush1.msra.mxu0 0.0
    %1502 = vmatprep.subr.mxu0 0.0
    %1503 = vmatpush1.msra.mxu0 0.0
    %1504 = vmatprep.subr.mxu0 0.0
    %1505 = vmatpush1.msra.mxu0 0.0
    %1506 = vmatprep.subr.mxu0 0.0
    %1507 = vmatpush1.msra.mxu0 0.0
    %1508 = vmatprep.subr.mxu0 0.0
    %1509 = vmatpush1.msra.mxu0 0.0
    %1510 = vmatprep.subr.mxu0 0.0
    %1511 = vmatpush1.msra.mxu0 0.0
    %1512 = vmatprep.subr.mxu0 0.0
    %1513 = vmatpush1.msra.mxu0 0.0
    %1514 = vmatprep.subr.mxu0 0.0
    %1515 = vmatpush1.msra.mxu0 0.0
    %1516 = vmatprep.subr.mxu0 0.0
    %1517 = vmatpush1.msra.mxu0 0.0
    %1518 = vmatprep.subr.mxu0 0.0
    %1519 = vmatpush1.msra.mxu0 0.0
    %1520 = vmatprep.subr.mxu0 0.0
    %1521 = vmatpush1.msra.mxu0 0.0
    %1522 = vmatprep.subr.mxu0 0.0
    %1523 = vmatpush1.msra.mxu0 0.0
    %1524 = vmatprep.subr.mxu0 0.0
    %1525 = vmatpush1.msra.mxu0 0.0
    %1526 = vmatprep.subr.mxu0 0.0
    %1527 = vmatpush1.msra.mxu0 0.0
    %1528 = vmatprep.subr.mxu0 0.0
    %1529 = vmatpush1.msra.mxu0 0.0
    %1530 = vmatprep.subr.mxu0 0.0
    %1531 = vmatpush1.msra.mxu0 0.0
    %1532 = vmatprep.subr.mxu0 0.0
    %1533 = vmatpush1.msra.mxu0 0.0
    %1534 = vmatprep.subr.mxu0 0.0
    %1535 = vmatpush1.msra.mxu0 0.0
    %1536 = vmatprep.subr.mxu0 0.0
    %1537 = vmatpush1.msra.mxu0 0.0
    %1538 = vmatprep.subr.mxu0 0.0
    %1539 = vmatpush1.msra.mxu0 0.0
    %1540 = vmatprep.subr.mxu0 0.0
    %1541 = vmatpush1.msra.mxu0 0.0
    %1542 = vmatprep.subr.mxu0 0.0
    %1543 = vmatpush1.msra.mxu0 0.0
    %1544 = vmatprep.mubr.f32.mxu0 0.0
    %1545 = vmatmul.mubr.f32.gmra.mrb[0].mxu0 %v1478
    %v1546 = vpop.f32.mrb[0].mxu0
    %v1547 = vadd.f32 0.0, %v1546
    %v1548 = vpop.f32.mrb[0].mxu0
    %1549 = vdwg.mxu0
    %v1550 = vrcp.pop %v1547
    %v1551 = vmul.f32 %v1476, %v1550
    %v1553 = vsel %vm104, %v1551, 0
    %1555 = vmatprep.subr.mxu0 0.0
    %1556 = vmatpush1.msra.mxu0 %v1374
    %1557 = vmatprep.subr.mxu0 0.0
    %1558 = vmatpush1.msra.mxu0 %v1375
    %1559 = vmatprep.subr.mxu0 0.0
    %1560 = vmatpush1.msra.mxu0 %v1376
    %1561 = vmatprep.subr.mxu0 0.0
    %1562 = vmatpush1.msra.mxu0 %v1377
    %1563 = vmatprep.subr.mxu0 0.0
    %1564 = vmatpush1.msra.mxu0 0.0
    %1565 = vmatprep.subr.mxu0 0.0
    %1566 = vmatpush1.msra.mxu0 0.0
    %1567 = vmatprep.subr.mxu0 0.0
    %1568 = vmatpush1.msra.mxu0 0.0
    %1569 = vmatprep.subr.mxu0 0.0
    %1570 = vmatpush1.msra.mxu0 0.0
    %1571 = vmatprep.subr.mxu0 0.0
    %1572 = vmatpush1.msra.mxu0 0.0
    %1573 = vmatprep.subr.mxu0 0.0
    %1574 = vmatpush1.msra.mxu0 0.0
    %1575 = vmatprep.subr.mxu0 0.0
    %1576 = vmatpush1.msra.mxu0 0.0
    %1577 = vmatprep.subr.mxu0 0.0
    %1578 = vmatpush1.msra.mxu0 0.0
    %1579 = vmatprep.subr.mxu0 0.0
    %1580 = vmatpush1.msra.mxu0 0.0
    %1581 = vmatprep.subr.mxu0 0.0
    %1582 = vmatpush1.msra.mxu0 0.0
    %1583 = vmatprep.subr.mxu0 0.0
    %1584 = vmatpush1.msra.mxu0 0.0
    %1585 = vmatprep.subr.mxu0 0.0
    %1586 = vmatpush1.msra.mxu0 0.0
    %1587 = vmatprep.subr.mxu0 0.0
    %1588 = vmatpush1.msra.mxu0 0.0
    %1589 = vmatprep.subr.mxu0 0.0
    %1590 = vmatpush1.msra.mxu0 0.0
    %1591 = vmatprep.subr.mxu0 0.0
    %1592 = vmatpush1.msra.mxu0 0.0
    %1593 = vmatprep.subr.mxu0 0.0
    %1594 = vmatpush1.msra.mxu0 0.0
    %1595 = vmatprep.subr.mxu0 0.0
    %1596 = vmatpush1.msra.mxu0 0.0
    %1597 = vmatprep.subr.mxu0 0.0
    %1598 = vmatpush1.msra.mxu0 0.0
    %1599 = vmatprep.subr.mxu0 0.0
    %1600 = vmatpush1.msra.mxu0 0.0
    %1601 = vmatprep.subr.mxu0 0.0
    %1602 = vmatpush1.msra.mxu0 0.0
    %1603 = vmatprep.subr.mxu0 0.0
    %1604 = vmatpush1.msra.mxu0 0.0
    %1605 = vmatprep.subr.mxu0 0.0
    %1606 = vmatpush1.msra.mxu0 0.0
    %1607 = vmatprep.subr.mxu0 0.0
    %1608 = vmatpush1.msra.mxu0 0.0
    %1609 = vmatprep.subr.mxu0 0.0
    %1610 = vmatpush1.msra.mxu0 0.0
    %1611 = vmatprep.subr.mxu0 0.0
    %1612 = vmatpush1.msra.mxu0 0.0
    %1613 = vmatprep.subr.mxu0 0.0
    %1614 = vmatpush1.msra.mxu0 0.0
    %1615 = vmatprep.subr.mxu0 0.0
    %1616 = vmatpush1.msra.mxu0 0.0
    %1617 = vmatprep.subr.mxu0 0.0
    %1618 = vmatpush1.msra.mxu0 0.0
    %1619 = vmatprep.mubr.f32.mxu0 0.0
    %1620 = vmatmul.mubr.f32.gmra.mrb[0].mxu0 %v1553
    %v1621 = vpop.f32.mrb[0].mxu0
    %v1622 = vadd.f32 0.0, %v1621
    %v1623 = vpop.f32.mrb[0].mxu0
    %1624 = vdwg.mxu0
    %v1625 = vmul.f32 %v1273, %v283
    %v1626 = vmul.f32 %v1273, %v285
    %v1627 = vmul.f32 %v1273, %v287
    %v1628 = vmul.f32 %v1273, %v289
    %v1629 = vmul.f32 %v1367, %v83
    %v1630 = vmul.f32 %v1367, %v84
    %v1631 = vmul.f32 %v1367, %v85
    %v1632 = vmul.f32 %v1367, %v86
    %1637 = vrot.lane.b32.xlu0 %v1625, 96
    %v1638 = vpop.permute.xlu0 %1637
    %1639 = vrot.lane.b32.xlu0 %v1626, 96
    %v1640 = vpop.permute.xlu0 %1639
    %1641 = vrot.lane.b32.xlu0 %v1627, 96
    %v1642 = vpop.permute.xlu0 %1641
    %1643 = vrot.lane.b32.xlu0 %v1628, 96
    %v1644 = vpop.permute.xlu0 %1643
    %v1646 = vsel %vm104, %v1273, 0
    %v1648 = vsel %vm104, %v1638, 0
    %v1650 = vsel %vm104, %v1640, 0
    %v1652 = vsel %vm104, %v1642, 0
    %v1654 = vsel %vm104, %v1644, 0
    %1656 = vmatprep.subr.mxu0 0.0
    %1657 = vmatpush1.xpose.msra.mxu0 %v1648
    %1658 = vmatprep.subr.mxu0 0.0
    %1659 = vmatpush1.xpose.msra.mxu0 %v1650
    %1660 = vmatprep.subr.mxu0 0.0
    %1661 = vmatpush1.xpose.msra.mxu0 %v1652
    %1662 = vmatprep.subr.mxu0 0.0
    %1663 = vmatpush1.xpose.msra.mxu0 %v1654
    %1664 = vmatprep.subr.mxu0 0.0
    %1665 = vmatpush1.xpose.msra.mxu0 0.0
    %1666 = vmatprep.subr.mxu0 0.0
    %1667 = vmatpush1.xpose.msra.mxu0 0.0
    %1668 = vmatprep.subr.mxu0 0.0
    %1669 = vmatpush1.xpose.msra.mxu0 0.0
    %1670 = vmatprep.subr.mxu0 0.0
    %1671 = vmatpush1.xpose.msra.mxu0 0.0
    %1672 = vmatprep.subr.mxu0 0.0
    %1673 = vmatpush1.xpose.msra.mxu0 0.0
    %1674 = vmatprep.subr.mxu0 0.0
    %1675 = vmatpush1.xpose.msra.mxu0 0.0
    %1676 = vmatprep.subr.mxu0 0.0
    %1677 = vmatpush1.xpose.msra.mxu0 0.0
    %1678 = vmatprep.subr.mxu0 0.0
    %1679 = vmatpush1.xpose.msra.mxu0 0.0
    %1680 = vmatprep.subr.mxu0 0.0
    %1681 = vmatpush1.xpose.msra.mxu0 0.0
    %1682 = vmatprep.subr.mxu0 0.0
    %1683 = vmatpush1.xpose.msra.mxu0 0.0
    %1684 = vmatprep.subr.mxu0 0.0
    %1685 = vmatpush1.xpose.msra.mxu0 0.0
    %1686 = vmatprep.subr.mxu0 0.0
    %1687 = vmatpush1.xpose.msra.mxu0 0.0
    %1688 = vmatprep.subr.mxu0 0.0
    %1689 = vmatpush1.xpose.msra.mxu0 0.0
    %1690 = vmatprep.subr.mxu0 0.0
    %1691 = vmatpush1.xpose.msra.mxu0 0.0
    %1692 = vmatprep.subr.mxu0 0.0
    %1693 = vmatpush1.xpose.msra.mxu0 0.0
    %1694 = vmatprep.subr.mxu0 0.0
    %1695 = vmatpush1.xpose.msra.mxu0 0.0
    %1696 = vmatprep.subr.mxu0 0.0
    %1697 = vmatpush1.xpose.msra.mxu0 0.0
    %1698 = vmatprep.subr.mxu0 0.0
    %1699 = vmatpush1.xpose.msra.mxu0 0.0
    %1700 = vmatprep.subr.mxu0 0.0
    %1701 = vmatpush1.xpose.msra.mxu0 0.0
    %1702 = vmatprep.subr.mxu0 0.0
    %1703 = vmatpush1.xpose.msra.mxu0 0.0
    %1704 = vmatprep.subr.mxu0 0.0
    %1705 = vmatpush1.xpose.msra.mxu0 0.0
    %1706 = vmatprep.subr.mxu0 0.0
    %1707 = vmatpush1.xpose.msra.mxu0 0.0
    %1708 = vmatprep.subr.mxu0 0.0
    %1709 = vmatpush1.xpose.msra.mxu0 0.0
    %1710 = vmatprep.subr.mxu0 0.0
    %1711 = vmatpush1.xpose.msra.mxu0 0.0
    %1712 = vmatprep.subr.mxu0 0.0
    %1713 = vmatpush1.xpose.msra.mxu0 0.0
    %1714 = vmatprep.subr.mxu0 0.0
    %1715 = vmatpush1.xpose.msra.mxu0 0.0
    %1716 = vmatprep.subr.mxu0 0.0
    %1717 = vmatpush1.xpose.msra.mxu0 0.0
    %1718 = vmatprep.subr.mxu0 0.0
    %1719 = vmatpush1.xpose.msra.mxu0 0.0
    %1720 = vmatprep.mubr.f32.mxu0 0.0
    %1721 = vmatmul.mubr.f32.gmra.mrb[0].mxu0 %v1646
    %v1722 = vpop.f32.mrb[0].mxu0
    %v1723 = vadd.f32 0.0, %v1722
    %v1724 = vpop.f32.mrb[0].mxu0
    %1725 = vdwg.mxu0
    %v1726 = vsel %vm104, %v1723, -inf
    %1727 = vmax.xlane.f32.xlu0 %v1726
    %v1728 = vpop.xlane.xlu0 %1727
    %v1729 = vsub.f32 %v1723, %v1728
    %v1730 = vmul.f32 %v1729, 1.442695
    %v1731 = vpow.pop %v1730
    %v1733 = vsel %vm104, %v1731, 0
    %1735 = vmatprep.subr.mxu0 0.0
    %1736 = vmatpush1.msra.mxu0 %v87
    %1737 = vmatprep.subr.mxu0 0.0
    %1738 = vmatpush1.msra.mxu0 %v88
    %1739 = vmatprep.subr.mxu0 0.0
    %1740 = vmatpush1.msra.mxu0 %v89
    %1741 = vmatprep.subr.mxu0 0.0
    %1742 = vmatpush1.msra.mxu0 %v90
    %1743 = vmatprep.subr.mxu0 0.0
    %1744 = vmatpush1.msra.mxu0 0.0
    %1745 = vmatprep.subr.mxu0 0.0
    %1746 = vmatpush1.msra.mxu0 0.0
    %1747 = vmatprep.subr.mxu0 0.0
    %1748 = vmatpush1.msra.mxu0 0.0
    %1749 = vmatprep.subr.mxu0 0.0
    %1750 = vmatpush1.msra.mxu0 0.0
    %1751 = vmatprep.subr.mxu0 0.0
    %1752 = vmatpush1.msra.mxu0 0.0
    %1753 = vmatprep.subr.mxu0 0.0
    %1754 = vmatpush1.msra.mxu0 0.0
    %1755 = vmatprep.subr.mxu0 0.0
    %1756 = vmatpush1.msra.mxu0 0.0
    %1757 = vmatprep.subr.mxu0 0.0
    %1758 = vmatpush1.msra.mxu0 0.0
    %1759 = vmatprep.subr.mxu0 0.0
    %1760 = vmatpush1.msra.mxu0 0.0
    %1761 = vmatprep.subr.mxu0 0.0
    %1762 = vmatpush1.msra.mxu0 0.0
    %1763 = vmatprep.subr.mxu0 0.0
    %1764 = vmatpush1.msra.mxu0 0.0
    %1765 = vmatprep.subr.mxu0 0.0
    %1766 = vmatpush1.msra.mxu0 0.0
    %1767 = vmatprep.subr.mxu0 0.0
    %1768 = vmatpush1.msra.mxu0 0.0
    %1769 = vmatprep.subr.mxu0 0.0
    %1770 = vmatpush1.msra.mxu0 0.0
    %1771 = vmatprep.subr.mxu0 0.0
    %1772 = vmatpush1.msra.mxu0 0.0
    %1773 = vmatprep.subr.mxu0 0.0
    %1774 = vmatpush1.msra.mxu0 0.0
    %1775 = vmatprep.subr.mxu0 0.0
    %1776 = vmatpush1.msra.mxu0 0.0
    %1777 = vmatprep.subr.mxu0 0.0
    %1778 = vmatpush1.msra.mxu0 0.0
    %1779 = vmatprep.subr.mxu0 0.0
    %1780 = vmatpush1.msra.mxu0 0.0
    %1781 = vmatprep.subr.mxu0 0.0
    %1782 = vmatpush1.msra.mxu0 0.0
    %1783 = vmatprep.subr.mxu0 0.0
    %1784 = vmatpush1.msra.mxu0 0.0
    %1785 = vmatprep.subr.mxu0 0.0
    %1786 = vmatpush1.msra.mxu0 0.0
    %1787 = vmatprep.subr.mxu0 0.0
    %1788 = vmatpush1.msra.mxu0 0.0
    %1789 = vmatprep.subr.mxu0 0.0
    %1790 = vmatpush1.msra.mxu0 0.0
    %1791 = vmatprep.subr.mxu0 0.0
    %1792 = vmatpush1.msra.mxu0 0.0
    %1793 = vmatprep.subr.mxu0 0.0
    %1794 = vmatpush1.msra.mxu0 0.0
    %1795 = vmatprep.subr.mxu0 0.0
    %1796 = vmatpush1.msra.mxu0 0.0
    %1797 = vmatprep.subr.mxu0 0.0
    %1798 = vmatpush1.msra.mxu0 0.0
    %1799 = vmatprep.mubr.f32.mxu0 0.0
    %1800 = vmatmul.mubr.f32.gmra.mrb[0].mxu0 %v1733
    %v1801 = vpop.f32.mrb[0].mxu0
    %v1802 = vadd.f32 0.0, %v1801
    %v1803 = vpop.f32.mrb[0].mxu0
    %1804 = vdwg.mxu0
    %v1805 = vrcp.pop %v1802
    %v1806 = vmul.f32 %v1731, %v1805
    %v1808 = vsel %vm104, %v1806, 0
    %1810 = vmatprep.subr.mxu0 0.0
    %1811 = vmatpush1.msra.mxu0 %v1629
    %1812 = vmatprep.subr.mxu0 0.0
    %1813 = vmatpush1.msra.mxu0 %v1630
    %1814 = vmatprep.subr.mxu0 0.0
    %1815 = vmatpush1.msra.mxu0 %v1631
    %1816 = vmatprep.subr.mxu0 0.0
    %1817 = vmatpush1.msra.mxu0 %v1632
    %1818 = vmatprep.subr.mxu0 0.0
    %1819 = vmatpush1.msra.mxu0 0.0
    %1820 = vmatprep.subr.mxu0 0.0
    %1821 = vmatpush1.msra.mxu0 0.0
    %1822 = vmatprep.subr.mxu0 0.0
    %1823 = vmatpush1.msra.mxu0 0.0
    %1824 = vmatprep.subr.mxu0 0.0
    %1825 = vmatpush1.msra.mxu0 0.0
    %1826 = vmatprep.subr.mxu0 0.0
    %1827 = vmatpush1.msra.mxu0 0.0
    %1828 = vmatprep.subr.mxu0 0.0
    %1829 = vmatpush1.msra.mxu0 0.0
    %1830 = vmatprep.subr.mxu0 0.0
    %1831 = vmatpush1.msra.mxu0 0.0
    %1832 = vmatprep.subr.mxu0 0.0
    %1833 = vmatpush1.msra.mxu0 0.0
    %1834 = vmatprep.subr.mxu0 0.0
    %1835 = vmatpush1.msra.mxu0 0.0
    %1836 = vmatprep.subr.mxu0 0.0
    %1837 = vmatpush1.msra.mxu0 0.0
    %1838 = vmatprep.subr.mxu0 0.0
    %1839 = vmatpush1.msra.mxu0 0.0
    %1840 = vmatprep.subr.mxu0 0.0
    %1841 = vmatpush1.msra.mxu0 0.0
    %1842 = vmatprep.subr.mxu0 0.0
    %1843 = vmatpush1.msra.mxu0 0.0
    %1844 = vmatprep.subr.mxu0 0.0
    %1845 = vmatpush1.msra.mxu0 0.0
    %1846 = vmatprep.subr.mxu0 0.0
    %1847 = vmatpush1.msra.mxu0 0.0
    %1848 = vmatprep.subr.mxu0 0.0
    %1849 = vmatpush1.msra.mxu0 0.0
    %1850 = vmatprep.subr.mxu0 0.0
    %1851 = vmatpush1.msra.mxu0 0.0
    %1852 = vmatprep.subr.mxu0 0.0
    %1853 = vmatpush1.msra.mxu0 0.0
    %1854 = vmatprep.subr.mxu0 0.0
    %1855 = vmatpush1.msra.mxu0 0.0
    %1856 = vmatprep.subr.mxu0 0.0
    %1857 = vmatpush1.msra.mxu0 0.0
    %1858 = vmatprep.subr.mxu0 0.0
    %1859 = vmatpush1.msra.mxu0 0.0
    %1860 = vmatprep.subr.mxu0 0.0
    %1861 = vmatpush1.msra.mxu0 0.0
    %1862 = vmatprep.subr.mxu0 0.0
    %1863 = vmatpush1.msra.mxu0 0.0
    %1864 = vmatprep.subr.mxu0 0.0
    %1865 = vmatpush1.msra.mxu0 0.0
    %1866 = vmatprep.subr.mxu0 0.0
    %1867 = vmatpush1.msra.mxu0 0.0
    %1868 = vmatprep.subr.mxu0 0.0
    %1869 = vmatpush1.msra.mxu0 0.0
    %1870 = vmatprep.subr.mxu0 0.0
    %1871 = vmatpush1.msra.mxu0 0.0
    %1872 = vmatprep.subr.mxu0 0.0
    %1873 = vmatpush1.msra.mxu0 0.0
    %1874 = vmatprep.mubr.f32.mxu0 0.0
    %1875 = vmatmul.mubr.f32.gmra.mrb[0].mxu0 %v1808
    %v1876 = vpop.f32.mrb[0].mxu0
    %v1877 = vadd.f32 0.0, %v1876
    %v1878 = vpop.f32.mrb[0].mxu0
    %1879 = vdwg.mxu0
    %s1880 = scalar_lea.vmem %s8, 32
    %v1881 = vld [vmem:[%s1880] sm:$0xff]
    %v1882 = vld [vmem:[%s1880 + $0x8] sm:$0xff]
    %v1883 = vld [vmem:[%s1880 + $0x10] sm:$0xff]
    %v1884 = vld [vmem:[%s1880 + $0x18] sm:$0xff]
    %s1885 = scalar_lea.vmem %s9, 1
    %v1886 = vld [vmem:[%s1885] sm:$0x1]
    %v1888 = vlaneseq
    %v1889 = vshrl.u32 %v1888, 7
    %v1890 = vsub.s32 0, %v1889
    %v1891 = vrot.slane %v1886, %v1890
    %v1894 = vsel %vm104, %v1622, 0
    %v1897 = vsel %vm104, %v1877, 0
    %1899 = vmatprep.subr.mxu0 0.0
    %1900 = vmatpush1.msra.mxu0 %v1881
    %1901 = vmatprep.subr.mxu0 0.0
    %1902 = vmatpush1.msra.mxu0 %v1882
    %1903 = vmatprep.subr.mxu0 0.0
    %1904 = vmatpush1.msra.mxu0 %v1883
    %1905 = vmatprep.subr.mxu0 0.0
    %1906 = vmatpush1.msra.mxu0 %v1884
    %1907 = vmatprep.subr.mxu0 0.0
    %1908 = vmatpush1.msra.mxu0 0.0
    %1909 = vmatprep.subr.mxu0 0.0
    %1910 = vmatpush1.msra.mxu0 0.0
    %1911 = vmatprep.subr.mxu0 0.0
    %1912 = vmatpush1.msra.mxu0 0.0
    %1913 = vmatprep.subr.mxu0 0.0
    %1914 = vmatpush1.msra.mxu0 0.0
    %1915 = vmatprep.subr.mxu0 0.0
    %1916 = vmatpush1.msra.mxu0 0.0
    %1917 = vmatprep.subr.mxu0 0.0
    %1918 = vmatpush1.msra.mxu0 0.0
    %1919 = vmatprep.subr.mxu0 0.0
    %1920 = vmatpush1.msra.mxu0 0.0
    %1921 = vmatprep.subr.mxu0 0.0
    %1922 = vmatpush1.msra.mxu0 0.0
    %1923 = vmatprep.subr.mxu0 0.0
    %1924 = vmatpush1.msra.mxu0 0.0
    %1925 = vmatprep.subr.mxu0 0.0
    %1926 = vmatpush1.msra.mxu0 0.0
    %1927 = vmatprep.subr.mxu0 0.0
    %1928 = vmatpush1.msra.mxu0 0.0
    %1929 = vmatprep.subr.mxu0 0.0
    %1930 = vmatpush1.msra.mxu0 0.0
    %1931 = vmatprep.subr.mxu0 0.0
    %1932 = vmatpush1.msra.mxu0 0.0
    %1933 = vmatprep.subr.mxu0 0.0
    %1934 = vmatpush1.msra.mxu0 0.0
    %1935 = vmatprep.subr.mxu0 0.0
    %1936 = vmatpush1.msra.mxu0 0.0
    %1937 = vmatprep.subr.mxu0 0.0
    %1938 = vmatpush1.msra.mxu0 0.0
    %1939 = vmatprep.subr.mxu0 0.0
    %1940 = vmatpush1.msra.mxu0 0.0
    %1941 = vmatprep.subr.mxu0 0.0
    %1942 = vmatpush1.msra.mxu0 0.0
    %1943 = vmatprep.subr.mxu0 0.0
    %1944 = vmatpush1.msra.mxu0 0.0
    %1945 = vmatprep.subr.mxu0 0.0
    %1946 = vmatpush1.msra.mxu0 0.0
    %1947 = vmatprep.subr.mxu0 0.0
    %1948 = vmatpush1.msra.mxu0 0.0
    %1949 = vmatprep.subr.mxu0 0.0
    %1950 = vmatpush1.msra.mxu0 0.0
    %1951 = vmatprep.subr.mxu0 0.0
    %1952 = vmatpush1.msra.mxu0 0.0
    %1953 = vmatprep.subr.mxu0 0.0
    %1954 = vmatpush1.msra.mxu0 0.0
    %1955 = vmatprep.subr.mxu0 0.0
    %1956 = vmatpush1.msra.mxu0 0.0
    %1957 = vmatprep.subr.mxu0 0.0
    %1958 = vmatpush1.msra.mxu0 0.0
    %1959 = vmatprep.subr.mxu0 0.0
    %1960 = vmatpush1.msra.mxu0 0.0
    %1961 = vmatprep.subr.mxu0 0.0
    %1962 = vmatpush1.msra.mxu0 0.0
    %1963 = vmatprep.mubr.f32.mxu0 0.0
    %1964 = vmatmul.mubr.f32.gmra.mrb[0].mxu0 %v1894
    %v1965 = vpop.f32.mrb[0].mxu0
    %v1966 = vadd.f32 %v1891, %v1965
    %v1967 = vpop.f32.mrb[0].mxu0
    %1968 = vmatprep.mubr.f32.mxu0 0.0
    %1969 = vmatmul.mubr.f32.gmra.mrb[0].mxu0 %v1897
    %v1970 = vpop.f32.mrb[0].mxu0
    %v1971 = vadd.f32 %v1891, %v1970
    %v1972 = vpop.f32.mrb[0].mxu0
    %1973 = vdwg.mxu0
    %v1974 = vadd.f32 %v1178, %v1966
    %v1975 = vadd.f32 %v1179, %v1971
    %s1976 = scalar_lea.vmem %s10, 1
    %v1977 = vld [vmem:[%s1976] sm:$0x1]
    %s1978 = scalar_lea.vmem %s11, 1
    %v1979 = vld [vmem:[%s1978] sm:$0x1]
    %v1980 = vsel %vm104, %v1974, 0.0
    %1981 = vadd.xlane.f32.xlu0 %v1980
    %v1982 = vpop.xlane.xlu0 %1981
    %v1983 = vsel %vm104, %v1975, 0.0
    %1984 = vadd.xlane.f32.xlu0 %v1983
    %v1985 = vpop.xlane.xlu0 %1984
    %v1986 = vmul.f32 %v1982, %v906
    %v1987 = vmul.f32 %v1985, %v906
    %v1988 = vsub.f32 %v1974, %v1986
    %v1989 = vsub.f32 %v1975, %v1987
    %v1990 = vmul.f32 %v1988, %v1988
    %v1991 = vmul.f32 %v1989, %v1989
    %v1992 = vsel %vm104, %v1990, 0.0
    %1993 = vadd.xlane.f32.xlu0 %v1992
    %v1994 = vpop.xlane.xlu0 %1993
    %v1995 = vsel %vm104, %v1991, 0.0
    %1996 = vadd.xlane.f32.xlu0 %v1995
    %v1997 = vpop.xlane.xlu0 %1996
    %v1998 = vmul.f32 %v1994, %v906
    %v1999 = vmul.f32 %v1997, %v906
    %v2000 = vadd.f32 %v1998, 1e-05
    %v2001 = vadd.f32 %v1999, 1e-05
    %v2002 = vrsqrt.pop %v2000
    %v2003 = vrsqrt.pop %v2001
    %v2004 = vmul.f32 %v1988, %v2002
    %v2005 = vmul.f32 %v1989, %v2003
    %v2007 = vlaneseq
    %v2008 = vshrl.u32 %v2007, 7
    %v2009 = vsub.s32 0, %v2008
    %v2010 = vrot.slane %v1977, %v2009
    %v2012 = vmul.f32 %v2004, %v2010
    %v2013 = vmul.f32 %v2005, %v2010
    %v2015 = vlaneseq
    %v2016 = vshrl.u32 %v2015, 7
    %v2017 = vsub.s32 0, %v2016
    %v2018 = vrot.slane %v1979, %v2017
    %v2020 = vadd.f32 %v2012, %v2018
    %v2021 = vadd.f32 %v2013, %v2018
    %s2022 = scalar_lea.vmem [#allocation2], 32
    %v2023 = vld [vmem:[%s2022] sm:$0xff]
    %v2024 = vld [vmem:[%s2022 + $0x8] sm:$0xff]
    %v2025 = vld [vmem:[%s2022 + $0x10] sm:$0xff]
    %v2026 = vld [vmem:[%s2022 + $0x18] sm:$0xff]
    %s2027 = scalar_lea.vmem %s13, 1
    %v2028 = vld [vmem:[%s2027] sm:$0x1]
    %v2030 = vlaneseq
    %v2031 = vshrl.u32 %v2030, 7
    %v2032 = vsub.s32 0, %v2031
    %v2033 = vrot.slane %v2028, %v2032
    %v2036 = vsel %vm104, %v2020, 0
    %v2039 = vsel %vm104, %v2021, 0
    %2041 = vmatprep.subr.mxu0 0.0
    %2042 = vmatpush1.msra.mxu0 %v2023
    %2043 = vmatprep.subr.mxu0 0.0
    %2044 = vmatpush1.msra.mxu0 %v2024
    %2045 = vmatprep.subr.mxu0 0.0
    %2046 = vmatpush1.msra.mxu0 %v2025
    %2047 = vmatprep.subr.mxu0 0.0
    %2048 = vmatpush1.msra.mxu0 %v2026
    %2049 = vmatprep.subr.mxu0 0.0
    %2050 = vmatpush1.msra.mxu0 0.0
    %2051 = vmatprep.subr.mxu0 0.0
    %2052 = vmatpush1.msra.mxu0 0.0
    %2053 = vmatprep.subr.mxu0 0.0
    %2054 = vmatpush1.msra.mxu0 0.0
    %2055 = vmatprep.subr.mxu0 0.0
    %2056 = vmatpush1.msra.mxu0 0.0
    %2057 = vmatprep.subr.mxu0 0.0
    %2058 = vmatpush1.msra.mxu0 0.0
    %2059 = vmatprep.subr.mxu0 0.0
    %2060 = vmatpush1.msra.mxu0 0.0
    %2061 = vmatprep.subr.mxu0 0.0
    %2062 = vmatpush1.msra.mxu0 0.0
    %2063 = vmatprep.subr.mxu0 0.0
    %2064 = vmatpush1.msra.mxu0 0.0
    %2065 = vmatprep.subr.mxu0 0.0
    %2066 = vmatpush1.msra.mxu0 0.0
    %2067 = vmatprep.subr.mxu0 0.0
    %2068 = vmatpush1.msra.mxu0 0.0
    %2069 = vmatprep.subr.mxu0 0.0
    %2070 = vmatpush1.msra.mxu0 0.0
    %2071 = vmatprep.subr.mxu0 0.0
    %2072 = vmatpush1.msra.mxu0 0.0
    %2073 = vmatprep.subr.mxu0 0.0
    %2074 = vmatpush1.msra.mxu0 0.0
    %2075 = vmatprep.subr.mxu0 0.0
    %2076 = vmatpush1.msra.mxu0 0.0
    %2077 = vmatprep.subr.mxu0 0.0
    %2078 = vmatpush1.msra.mxu0 0.0
    %2079 = vmatprep.subr.mxu0 0.0
    %2080 = vmatpush1.msra.mxu0 0.0
    %2081 = vmatprep.subr.mxu0 0.0
    %2082 = vmatpush1.msra.mxu0 0.0
    %2083 = vmatprep.subr.mxu0 0.0
    %2084 = vmatpush1.msra.mxu0 0.0
    %2085 = vmatprep.subr.mxu0 0.0
    %2086 = vmatpush1.msra.mxu0 0.0
    %2087 = vmatprep.subr.mxu0 0.0
    %2088 = vmatpush1.msra.mxu0 0.0
    %2089 = vmatprep.subr.mxu0 0.0
    %2090 = vmatpush1.msra.mxu0 0.0
    %2091 = vmatprep.subr.mxu0 0.0
    %2092 = vmatpush1.msra.mxu0 0.0
    %2093 = vmatprep.subr.mxu0 0.0
    %2094 = vmatpush1.msra.mxu0 0.0
    %2095 = vmatprep.subr.mxu0 0.0
    %2096 = vmatpush1.msra.mxu0 0.0
    %2097 = vmatprep.subr.mxu0 0.0
    %2098 = vmatpush1.msra.mxu0 0.0
    %2099 = vmatprep.subr.mxu0 0.0
    %2100 = vmatpush1.msra.mxu0 0.0
    %2101 = vmatprep.subr.mxu0 0.0
    %2102 = vmatpush1.msra.mxu0 0.0
    %2103 = vmatprep.subr.mxu0 0.0
    %2104 = vmatpush1.msra.mxu0 0.0
    %2105 = vmatprep.mubr.f32.mxu0 0.0
    %2106 = vmatmul.mubr.f32.gmra.mrb[0].mxu0 %v2036
    %v2107 = vpop.f32.mrb[0].mxu0
    %v2108 = vadd.f32 %v2033, %v2107
    %v2109 = vpop.f32.mrb[0].mxu0
    %2110 = vmatprep.mubr.f32.mxu0 0.0
    %2111 = vmatmul.mubr.f32.gmra.mrb[0].mxu0 %v2039
    %v2112 = vpop.f32.mrb[0].mxu0
    %v2113 = vadd.f32 %v2033, %v2112
    %v2114 = vpop.f32.mrb[0].mxu0
    %2115 = vdwg.mxu0
    %v2116 = vmax.f32 %v2108, 0.0
    %v2117 = vmax.f32 %v2113, 0.0
    %s2118 = scalar_lea.vmem %s14, 64
    %v2119 = vld [vmem:[%s2118] sm:$0xff]
    %v2120 = vld [vmem:[%s2118 + $0x8] sm:$0xff]
    %v2121 = vld [vmem:[%s2118 + $0x10] sm:$0xff]
    %v2122 = vld [vmem:[%s2118 + $0x18] sm:$0xff]
    %v2123 = vld [vmem:[%s2118 + $0x20] sm:$0xff]
    %v2124 = vld [vmem:[%s2118 + $0x28] sm:$0xff]
    %v2125 = vld [vmem:[%s2118 + $0x30] sm:$0xff]
    %v2126 = vld [vmem:[%s2118 + $0x38] sm:$0xff]
    %s2127 = scalar_lea.vmem %s15, 1
    %v2128 = vld [vmem:[%s2127] sm:$0x1]
    %v2130 = vlaneseq
    %v2131 = vshrl.u32 %v2130, 7
    %v2132 = vsub.s32 0, %v2131
    %v2133 = vrot.slane %v2128, %v2132
    %v2136 = vsel %vm1052, %v2116, 0
    %v2139 = vsel %vm1052, %v2117, 0
    %2141 = vmatprep.subr.mxu0 0.0
    %2142 = vmatpush1.msra.mxu0 %v2119
    %2143 = vmatprep.subr.mxu0 0.0
    %2144 = vmatpush1.msra.mxu0 %v2120
    %2145 = vmatprep.subr.mxu0 0.0
    %2146 = vmatpush1.msra.mxu0 %v2121
    %2147 = vmatprep.subr.mxu0 0.0
    %2148 = vmatpush1.msra.mxu0 %v2122
    %2149 = vmatprep.subr.mxu0 0.0
    %2150 = vmatpush1.msra.mxu0 %v2123
    %2151 = vmatprep.subr.mxu0 0.0
    %2152 = vmatpush1.msra.mxu0 %v2124
    %2153 = vmatprep.subr.mxu0 0.0
    %2154 = vmatpush1.msra.mxu0 %v2125
    %2155 = vmatprep.subr.mxu0 0.0
    %2156 = vmatpush1.msra.mxu0 %v2126
    %2157 = vmatprep.subr.mxu0 0.0
    %2158 = vmatpush1.msra.mxu0 0.0
    %2159 = vmatprep.subr.mxu0 0.0
    %2160 = vmatpush1.msra.mxu0 0.0
    %2161 = vmatprep.subr.mxu0 0.0
    %2162 = vmatpush1.msra.mxu0 0.0
    %2163 = vmatprep.subr.mxu0 0.0
    %2164 = vmatpush1.msra.mxu0 0.0
    %2165 = vmatprep.subr.mxu0 0.0
    %2166 = vmatpush1.msra.mxu0 0.0
    %2167 = vmatprep.subr.mxu0 0.0
    %2168 = vmatpush1.msra.mxu0 0.0
    %2169 = vmatprep.subr.mxu0 0.0
    %2170 = vmatpush1.msra.mxu0 0.0
    %2171 = vmatprep.subr.mxu0 0.0
    %2172 = vmatpush1.msra.mxu0 0.0
    %2173 = vmatprep.subr.mxu0 0.0
    %2174 = vmatpush1.msra.mxu0 0.0
    %2175 = vmatprep.subr.mxu0 0.0
    %2176 = vmatpush1.msra.mxu0 0.0
    %2177 = vmatprep.subr.mxu0 0.0
    %2178 = vmatpush1.msra.mxu0 0.0
    %2179 = vmatprep.subr.mxu0 0.0
    %2180 = vmatpush1.msra.mxu0 0.0
    %2181 = vmatprep.subr.mxu0 0.0
    %2182 = vmatpush1.msra.mxu0 0.0
    %2183 = vmatprep.subr.mxu0 0.0
    %2184 = vmatpush1.msra.mxu0 0.0
    %2185 = vmatprep.subr.mxu0 0.0
    %2186 = vmatpush1.msra.mxu0 0.0
    %2187 = vmatprep.subr.mxu0 0.0
    %2188 = vmatpush1.msra.mxu0 0.0
    %2189 = vmatprep.subr.mxu0 0.0
    %2190 = vmatpush1.msra.mxu0 0.0
    %2191 = vmatprep.subr.mxu0 0.0
    %2192 = vmatpush1.msra.mxu0 0.0
    %2193 = vmatprep.subr.mxu0 0.0
    %2194 = vmatpush1.msra.mxu0 0.0
    %2195 = vmatprep.subr.mxu0 0.0
    %2196 = vmatpush1.msra.mxu0 0.0
    %2197 = vmatprep.subr.mxu0 0.0
    %2198 = vmatpush1.msra.mxu0 0.0
    %2199 = vmatprep.subr.mxu0 0.0
    %2200 = vmatpush1.msra.mxu0 0.0
    %2201 = vmatprep.subr.mxu0 0.0
    %2202 = vmatpush1.msra.mxu0 0.0
    %2203 = vmatprep.subr.mxu0 0.0
    %2204 = vmatpush1.msra.mxu0 0.0
    %2205 = vmatprep.mubr.f32.mxu0 0.0
    %2206 = vmatmul.mubr.f32.gmra.mrb[0].mxu0 %v2136
    %v2207 = vpop.f32.mrb[0].mxu0
    %v2208 = vadd.f32 %v2133, %v2207
    %v2209 = vpop.f32.mrb[0].mxu0
    %2210 = vmatprep.mubr.f32.mxu0 0.0
    %2211 = vmatmul.mubr.f32.gmra.mrb[0].mxu0 %v2139
    %v2212 = vpop.f32.mrb[0].mxu0
    %v2213 = vadd.f32 %v2133, %v2212
    %v2214 = vpop.f32.mrb[0].mxu0
    %2215 = vdwg.mxu0
    %v2216 = vadd.f32 %v2020, %v2208
    %v2217 = vadd.f32 %v2021, %v2213
    %s2218 = scalar_lea.vmem %s16, 1
    %v2219 = vld [vmem:[%s2218] sm:$0x1]
    %s2220 = scalar_lea.vmem %s17, 1
    %v2221 = vld [vmem:[%s2220] sm:$0x1]
    %v2222 = vsel %vm104, %v2216, 0.0
    %2223 = vadd.xlane.f32.xlu0 %v2222
    %v2224 = vpop.xlane.xlu0 %2223
    %v2225 = vsel %vm104, %v2217, 0.0
    %2226 = vadd.xlane.f32.xlu0 %v2225
    %v2227 = vpop.xlane.xlu0 %2226
    %v2228 = vmul.f32 %v2224, %v906
    %v2229 = vmul.f32 %v2227, %v906
    %v2230 = vsub.f32 %v2216, %v2228
    %v2231 = vsub.f32 %v2217, %v2229
    %v2232 = vmul.f32 %v2230, %v2230
    %v2233 = vmul.f32 %v2231, %v2231
    %v2234 = vsel %vm104, %v2232, 0.0
    %2235 = vadd.xlane.f32.xlu0 %v2234
    %v2236 = vpop.xlane.xlu0 %2235
    %v2237 = vsel %vm104, %v2233, 0.0
    %2238 = vadd.xlane.f32.xlu0 %v2237
    %v2239 = vpop.xlane.xlu0 %2238
    %v2240 = vmul.f32 %v2236, %v906
    %v2241 = vmul.f32 %v2239, %v906
    %v2242 = vadd.f32 %v2240, 1e-05
    %v2243 = vadd.f32 %v2241, 1e-05
    %v2244 = vrsqrt.pop %v2242
    %v2245 = vrsqrt.pop %v2243
    %v2246 = vmul.f32 %v2230, %v2244
    %v2247 = vmul.f32 %v2231, %v2245
    %v2249 = vlaneseq
    %v2250 = vshrl.u32 %v2249, 7
    %v2251 = vsub.s32 0, %v2250
    %v2252 = vrot.slane %v2219, %v2251
    %v2254 = vmul.f32 %v2246, %v2252
    %v2255 = vmul.f32 %v2247, %v2252
    %v2257 = vlaneseq
    %v2258 = vshrl.u32 %v2257, 7
    %v2259 = vsub.s32 0, %v2258
    %v2260 = vrot.slane %v2221, %v2259
    %v2262 = vadd.f32 %v2254, %v2260
    %v2263 = vadd.f32 %v2255, %v2260
    %v2264 = vld [vmem:[%s18] sm:$0x1]
    %v2265 = vld [vmem:[%s19] sm:$0x1]
    %v2266 = vsel %vm104, %v2262, 0.0
    %2267 = vadd.xlane.f32.xlu0 %v2266
    %v2268 = vpop.xlane.xlu0 %2267
    %v2269 = vsel %vm104, %v2263, 0.0
    %2270 = vadd.xlane.f32.xlu0 %v2269
    %v2271 = vpop.xlane.xlu0 %2270
    %v2272 = vmul.f32 %v2268, %v906
    %v2273 = vmul.f32 %v2271, %v906
    %v2274 = vsub.f32 %v2262, %v2272
    %v2275 = vsub.f32 %v2263, %v2273
    %v2276 = vmul.f32 %v2274, %v2274
    %v2277 = vmul.f32 %v2275, %v2275
    %v2278 = vsel %vm104, %v2276, 0.0
    %2279 = vadd.xlane.f32.xlu0 %v2278
    %v2280 = vpop.xlane.xlu0 %2279
    %v2281 = vsel %vm104, %v2277, 0.0
    %2282 = vadd.xlane.f32.xlu0 %v2281
    %v2283 = vpop.xlane.xlu0 %2282
    %v2284 = vmul.f32 %v2280, %v906
    %v2285 = vmul.f32 %v2283, %v906
    %v2286 = vadd.f32 %v2284, 1e-05
    %v2287 = vadd.f32 %v2285, 1e-05
    %v2288 = vrsqrt.pop %v2286
    %v2289 = vrsqrt.pop %v2287
    %v2290 = vmul.f32 %v2274, %v2288
    %v2291 = vmul.f32 %v2275, %v2289
    %v2293 = vlaneseq
    %v2294 = vshrl.u32 %v2293, 7
    %v2295 = vsub.s32 0, %v2294
    %v2296 = vrot.slane %v2264, %v2295
    %v2298 = vmul.f32 %v2290, %v2296
    %v2299 = vmul.f32 %v2291, %v2296
    %v2301 = vlaneseq
    %v2302 = vshrl.u32 %v2301, 7
    %v2303 = vsub.s32 0, %v2302
    %v2304 = vrot.slane %v2265, %v2303
    %v2306 = vadd.f32 %v2298, %v2304
    %v2307 = vadd.f32 %v2299, %v2304
    %2308 = vst.msk [vmem:[%s20] sm:$0xff] %vm104, %v2306
    %2309 = vst.msk [vmem:[%s20 + $0x8] sm:$0xff] %vm104, %v2307
    // Predicated region
    $region86: #{transformer_encoder.1} parent=1 // pred_check
      _
    $region87: #{transformer_encoder.1} parent=1 // pred_check_branch
      %2311 = sbr.rel (0) target = $region89
    $region88: #{transformer_encoder.1} parent=1 // pred_region
      _
    $region89: #{transformer_encoder.1} parent=1 // pred_fallthru
      _
    // Predicated region
    $region90: #{transformer_encoder.1} parent=1 // pred_check
      _
    $region91: #{transformer_encoder.1} parent=1 // pred_check_branch
      %2313 = sbr.rel (0) target = $region93
    $region92: #{transformer_encoder.1} parent=1 // pred_region
      _
    $region93: #{transformer_encoder.1} parent=1 // pred_fallthru
      _
    %2314 = vsyncpa [#allocation3], 1

</llo_original>
